<compile_context>
chip_gen: v6e
topology: v6e:2x2x1
jax: 0.10.0
libtpu: 0.0.40
codegen_flags: <defaults>
</compile_context>

<pallas_src>
import functools

import jax
import jax.numpy as jnp
import numpy as np
from jax import lax
from jax.experimental import pallas as pl
from jax.experimental.pallas import tpu as pltpu

EPS = 1e-5


def _transconv_kernel(x_ref, scale_ref, shift_ref, w_ref, b_ref, y_ref, xpad_ref,
                      *, H, W, C, Co):
    """One batch image per grid step.

    x_ref:     (H, W, C)       NHWC input block (batch dim squeezed), f32
    scale_ref: (1, C)          BN scale = gamma * rsqrt(var + eps)
    shift_ref: (1, C)          BN shift = beta - mean * scale
    w_ref:     (4, C, 4*Co)    per-tap weights, parity columns [ee, eo, oe, oo]
    b_ref:     (1, 4*Co)       bias tiled over the 4 parities, f32
    y_ref:     (H, W, 4*Co)    parity-packed output block, f32
    xpad_ref:  (H+1, W+1, C)   scratch in compute dtype: BN+ReLU'd input, zero halo
    """
    Hp, Wp = H + 1, W + 1
    cdt = xpad_ref.dtype  # matmul operand dtype (bf16 or f32); accumulation is f32

    # ---- BN affine + ReLU in f32 on the VPU, single cast into the scratch ----
    xb = jnp.maximum(x_ref[...] * scale_ref[0] + shift_ref[0], 0.0)
    xpad_ref[:H, :W, :] = xb.astype(cdt)

    # ---- zero only the pad row / pad column of the halo ----
    xpad_ref[H:H + 1, :, :] = jnp.zeros((1, Wp, C), cdt)
    xpad_ref[:, W:W + 1, :] = jnp.zeros((Hp, 1, C), cdt)

    # ---- 4 packed matmuls, one per spatial tap, summed into (H*W, 4*Co) ----
    # tap 0: x[m, n], tap 1: x[m, n+1], tap 2: x[m+1, n], tap 3: x[m+1, n+1]
    def tap_mm(t, hs, ws):
        a = xpad_ref[hs:hs + H, ws:ws + W, :]            # (H, W, C), already cdt
        return jnp.dot(a.reshape(H * W, C), w_ref[t],
                       preferred_element_type=jnp.float32)

    y = (tap_mm(0, 0, 0) + tap_mm(1, 0, 1) + tap_mm(2, 1, 0) + tap_mm(3, 1, 1)
         + b_ref[0])                                      # (H*W, 4*Co), f32

    y_ref[...] = y.reshape(H, W, 4 * Co).astype(y_ref.dtype)


def trans_conv_forward(x_nchw, w_pt, bias, gamma, beta,
                       *, compute_dtype=jnp.bfloat16):
    """TransConv.forward.  x_nchw: (N, C, H, W) -> (N, C//2, 2H, 2W).

    compute_dtype: dtype of the MXU operands (accumulation is always f32).
    """
    N, C, H, W = x_nchw.shape
    Co = w_pt.shape[1]

    xf = x_nchw.astype(jnp.float32)

    # ---- BatchNorm2d training-mode batch stats (biased var), two-pass ----
    mean = jnp.mean(xf, axis=(0, 2, 3))
    var = jnp.mean(jnp.square(xf - mean.reshape(1, C, 1, 1)), axis=(0, 2, 3))
    scale = gamma.astype(jnp.float32) * lax.rsqrt(var + EPS)   # (C,)
    shift = beta.astype(jnp.float32) - mean * scale            # (C,)

    x_nhwc = jnp.transpose(xf, (0, 2, 3, 1))                   # (N, H, W, C)

    # ---- pack the 3x3 stride-2 transposed-conv weight per tap ----
    # parity formulas (validated against the dilated-conv reference):
    #   ee = x00 @ w[1,1]
    #   eo = x00 @ w[1,2] + x01 @ w[1,0]
    #   oe = x00 @ w[2,1] + x10 @ w[0,1]
    #   oo = x00 @ w[2,2] + x01 @ w[2,0] + x10 @ w[0,2] + x11 @ w[0,0]
    w = jnp.transpose(w_pt, (2, 3, 0, 1)).astype(jnp.float32)  # (3, 3, C, Co)
    z = jnp.zeros((C, Co), jnp.float32)
    w00 = jnp.concatenate([w[1, 1], w[1, 2], w[2, 1], w[2, 2]], axis=1)
    w01 = jnp.concatenate([z,       w[1, 0], z,       w[2, 0]], axis=1)
    w10 = jnp.concatenate([z,       z,       w[0, 1], w[0, 2]], axis=1)
    w11 = jnp.concatenate([z,       z,       z,       w[0, 0]], axis=1)
    wpack = jnp.stack([w00, w01, w10, w11], axis=0).astype(compute_dtype)  # (4,C,4Co)
    bias4 = jnp.tile(bias.astype(jnp.float32), 4).reshape(1, 4 * Co)

    kernel = functools.partial(_transconv_kernel, H=H, W=W, C=C, Co=Co)

    y_packed = pl.pallas_call(
        kernel,
        out_shape=jax.ShapeDtypeStruct((N, H, W, 4 * Co), jnp.float32),
        grid=(N,),
        in_specs=[
            pl.BlockSpec((None, H, W, C), lambda b: (b, 0, 0, 0)),     # x (per image)
            pl.BlockSpec((1, C), lambda b: (0, 0)),                    # scale
            pl.BlockSpec((1, C), lambda b: (0, 0)),                    # shift
            pl.BlockSpec((4, C, 4 * Co), lambda b: (0, 0, 0)),         # packed weights
            pl.BlockSpec((1, 4 * Co), lambda b: (0, 0)),               # bias
        ],
        out_specs=pl.BlockSpec((None, H, W, 4 * Co), lambda b: (b, 0, 0, 0)),
        scratch_shapes=[pltpu.VMEM((H + 1, W + 1, C), compute_dtype)],
        compiler_params=pltpu.CompilerParams(
            dimension_semantics=("parallel",)),
    )(x_nhwc, scale.reshape(1, C), shift.reshape(1, C), wpack, bias4)

    # ---- parity interleave + back to NCHW: one reshape + one transpose ----
    y = y_packed.reshape(N, H, W, 2, 2, Co)        # (N, m, n, ph, pw, c)
    y = jnp.transpose(y, (0, 5, 1, 3, 2, 4))       # (N, c, m, ph, n, pw)
    return y.reshape(N, Co, 2 * H, 2 * W)


def _reference(x_nchw, w_pt, bias, gamma, beta):
    """Pure-JAX reference: BN(train) + ReLU + ConvTranspose2d via dilated conv."""
    N, C, H, W = x_nchw.shape
    mean = jnp.mean(x_nchw, axis=(0, 2, 3), keepdims=True)
    var = jnp.mean((x_nchw - mean) ** 2, axis=(0, 2, 3), keepdims=True)
    xb = (x_nchw - mean) * lax.rsqrt(var + EPS)
    xb = xb * gamma.reshape(1, C, 1, 1) + beta.reshape(1, C, 1, 1)
    xb = jnp.maximum(xb, 0.0)
    w_conv = jnp.transpose(w_pt, (1, 0, 2, 3))[:, :, ::-1, ::-1]  # (Co, C, 3, 3)
    y = lax.conv_general_dilated(xb, w_conv, window_strides=(1, 1),
                                 padding=[(1, 2), (1, 2)], lhs_dilation=(2, 2),
                                 dimension_numbers=('NCHW', 'OIHW', 'NCHW'))
    return y + bias.reshape(1, -1, 1, 1)


if __name__ == "__main__":
    key = jax.random.PRNGKey(0)
    k1, k2, k3 = jax.random.split(key, 3)

    N, C, H, W = 2, 4, 16, 16          # in_channels = 4 -> out_channels = 2
    Co = C // 2

    x = jax.random.normal(k1, (N, C, H, W), dtype=jnp.float32)
    # ConvTranspose2d weight layout: (in_channels, out_channels, kH, kW)
    w_pt = jax.random.normal(k2, (C, Co, 3, 3), dtype=jnp.float32) * 0.1
    bias = jax.random.normal(k3, (Co,), dtype=jnp.float32) * 0.1
    gamma = jnp.ones((C,), dtype=jnp.float32)   # BatchNorm2d default init
    beta = jnp.zeros((C,), dtype=jnp.float32)

    ref = jax.block_until_ready(_reference(x, w_pt, bias, gamma, beta))

    # Exact path (f32 MXU operands): tight check.
    out32 = jax.block_until_ready(
        trans_conv_forward(x, w_pt, bias, gamma, beta, compute_dtype=jnp.float32))
    assert out32.shape == (N, Co, 2 * H, 2 * W), out32.shape
    np.testing.assert_allclose(np.asarray(out32), np.asarray(ref),
                               rtol=1e-4, atol=1e-4)

    # Default fast path (bf16 MXU operands, f32 accumulation): loose check.
    outbf = jax.block_until_ready(
        trans_conv_forward(x, w_pt, bias, gamma, beta, compute_dtype=jnp.bfloat16))
    assert outbf.shape == (N, Co, 2 * H, 2 * W), outbf.shape
    np.testing.assert_allclose(np.asarray(outbf), np.asarray(ref),
                               rtol=3e-2, atol=3e-2)

    print("KERNEL_OK")
</pallas_src>

<mosaic_0001>
module attributes {stable_mosaic.version = 11 : i64} {
  func.func @_transconv_kernel(%arg0: i32, %arg1: memref<1x16x16x4xf32, #tpu.memory_space<vmem>>, %arg2: memref<1x4xf32, #tpu.memory_space<vmem>>, %arg3: memref<1x4xf32, #tpu.memory_space<vmem>>, %arg4: memref<4x4x8xf32, #tpu.memory_space<vmem>>, %arg5: memref<1x8xf32, #tpu.memory_space<vmem>>, %arg6: memref<1x16x16x8xf32, #tpu.memory_space<vmem>>, %arg7: memref<17x17x4xf32, #tpu.memory_space<vmem>>) attributes {dimension_semantics = [#tpu.dimension_semantics<parallel>], iteration_bounds = array<i64: 2>, scalar_prefetch = 0 : i64, scratch_operands = 1 : i64, tpu.core_type = #tpu.core_type<tc>, window_params = [{transform_indices = @transform_0, window_bounds = array<i64: 1, 16, 16, 4>}, {pipeline_mode = #tpu.pipeline_mode<synchronous>, transform_indices = @transform_1, window_bounds = array<i64: 1, 4>}, {pipeline_mode = #tpu.pipeline_mode<synchronous>, transform_indices = @transform_2, window_bounds = array<i64: 1, 4>}, {pipeline_mode = #tpu.pipeline_mode<synchronous>, transform_indices = @transform_3, window_bounds = array<i64: 4, 4, 8>}, {pipeline_mode = #tpu.pipeline_mode<synchronous>, transform_indices = @transform_4, window_bounds = array<i64: 1, 8>}, {transform_indices = @transform_5, window_bounds = array<i64: 1, 16, 16, 8>}]} {
    %c0 = arith.constant 0 : index
    %c0_0 = arith.constant 0 : index
    %c0_1 = arith.constant 0 : index
    %c0_2 = arith.constant 0 : index
    %0 = vector.load %arg1[%c0, %c0_0, %c0_1, %c0_2] : memref<1x16x16x4xf32, #tpu.memory_space<vmem>>, vector<1x16x16x4xf32>
    %1 = vector.shape_cast %0 : vector<1x16x16x4xf32> to vector<16x16x4xf32>
    %c0_3 = arith.constant 0 : index
    %c0_4 = arith.constant 0 : index
    %2 = vector.load %arg2[%c0_3, %c0_4] : memref<1x4xf32, #tpu.memory_space<vmem>>, vector<1x4xf32>
    %3 = vector.shape_cast %2 : vector<1x4xf32> to vector<4xf32>
    %4 = vector.shape_cast %3 : vector<4xf32> to vector<1x1x4xf32>
    %5 = vector.broadcast %4 : vector<1x1x4xf32> to vector<16x16x4xf32>
    %6 = arith.mulf %1, %5 : vector<16x16x4xf32>
    %c0_5 = arith.constant 0 : index
    %c0_6 = arith.constant 0 : index
    %7 = vector.load %arg3[%c0_5, %c0_6] : memref<1x4xf32, #tpu.memory_space<vmem>>, vector<1x4xf32>
    %8 = vector.shape_cast %7 : vector<1x4xf32> to vector<4xf32>
    %9 = vector.shape_cast %8 : vector<4xf32> to vector<1x1x4xf32>
    %10 = vector.broadcast %9 : vector<1x1x4xf32> to vector<16x16x4xf32>
    %11 = arith.addf %6, %10 : vector<16x16x4xf32>
    %cst = arith.constant 0.000000e+00 : f32
    %12 = vector.broadcast %cst : f32 to vector<16x16x4xf32>
    %13 = arith.maximumf %11, %12 : vector<16x16x4xf32>
    %c0_7 = arith.constant 0 : index
    %c0_8 = arith.constant 0 : index
    %c0_9 = arith.constant 0 : index
    %14 = vector.load %arg7[%c0_7, %c0_8, %c0_9] : memref<17x17x4xf32, #tpu.memory_space<vmem>>, vector<16x16x4xf32>
    tpu.vector_store %arg7[%c0_7, %c0_8, %c0_9], %13 {strides = array<i32>} : memref<17x17x4xf32, #tpu.memory_space<vmem>>, vector<16x16x4xf32>,
    %cst_10 = arith.constant 0.000000e+00 : f32
    %15 = vector.broadcast %cst_10 : f32 to vector<1x17x4xf32>
    %c16 = arith.constant 16 : index
    %c0_11 = arith.constant 0 : index
    %c0_12 = arith.constant 0 : index
    %16 = vector.load %arg7[%c16, %c0_11, %c0_12] : memref<17x17x4xf32, #tpu.memory_space<vmem>>, vector<1x17x4xf32>
    tpu.vector_store %arg7[%c16, %c0_11, %c0_12], %15 {strides = array<i32>} : memref<17x17x4xf32, #tpu.memory_space<vmem>>, vector<1x17x4xf32>,
    %cst_13 = arith.constant 0.000000e+00 : f32
    %17 = vector.broadcast %cst_13 : f32 to vector<17x1x4xf32>
    %c0_14 = arith.constant 0 : index
    %c16_15 = arith.constant 16 : index
    %c0_16 = arith.constant 0 : index
    %18 = vector.load %arg7[%c0_14, %c16_15, %c0_16] : memref<17x17x4xf32, #tpu.memory_space<vmem>>, vector<17x1x4xf32>
    tpu.vector_store %arg7[%c0_14, %c16_15, %c0_16], %17 {strides = array<i32>} : memref<17x17x4xf32, #tpu.memory_space<vmem>>, vector<17x1x4xf32>,
    %c0_17 = arith.constant 0 : index
    %c0_18 = arith.constant 0 : index
    %c0_19 = arith.constant 0 : index
    %19 = vector.load %arg7[%c0_17, %c0_18, %c0_19] : memref<17x17x4xf32, #tpu.memory_space<vmem>>, vector<16x16x4xf32>
    %20 = vector.shape_cast %19 : vector<16x16x4xf32> to vector<256x4xf32>
    %c0_20 = arith.constant 0 : index
    %c0_21 = arith.constant 0 : index
    %c0_22 = arith.constant 0 : index
    %21 = vector.load %arg4[%c0_20, %c0_21, %c0_22] : memref<4x4x8xf32, #tpu.memory_space<vmem>>, vector<1x4x8xf32>
    %22 = vector.shape_cast %21 : vector<1x4x8xf32> to vector<4x8xf32>
    %cst_23 = arith.constant dense<0.000000e+00> : vector<256x8xf32>
    %23 = tpu.matmul %20, %22, %cst_23 {dimension_numbers = #tpu.dot_dimension_numbers<[1], [0], [0], [1], [0, 0, 1, 1], [], []>} : vector<256x4xf32>, vector<4x8xf32>, vector<256x8xf32> -> vector<256x8xf32>
    %c0_24 = arith.constant 0 : index
    %c1 = arith.constant 1 : index
    %c0_25 = arith.constant 0 : index
    %24 = vector.load %arg7[%c0_24, %c1, %c0_25] : memref<17x17x4xf32, #tpu.memory_space<vmem>>, vector<16x16x4xf32>
    %25 = vector.shape_cast %24 : vector<16x16x4xf32> to vector<256x4xf32>
    %c1_26 = arith.constant 1 : index
    %c0_27 = arith.constant 0 : index
    %c0_28 = arith.constant 0 : index
    %26 = vector.load %arg4[%c1_26, %c0_27, %c0_28] : memref<4x4x8xf32, #tpu.memory_space<vmem>>, vector<1x4x8xf32>
    %27 = vector.shape_cast %26 : vector<1x4x8xf32> to vector<4x8xf32>
    %cst_29 = arith.constant dense<0.000000e+00> : vector<256x8xf32>
    %28 = tpu.matmul %25, %27, %cst_29 {dimension_numbers = #tpu.dot_dimension_numbers<[1], [0], [0], [1], [0, 0, 1, 1], [], []>} : vector<256x4xf32>, vector<4x8xf32>, vector<256x8xf32> -> vector<256x8xf32>
    %29 = arith.addf %23, %28 : vector<256x8xf32>
    %c1_30 = arith.constant 1 : index
    %c0_31 = arith.constant 0 : index
    %c0_32 = arith.constant 0 : index
    %30 = vector.load %arg7[%c1_30, %c0_31, %c0_32] : memref<17x17x4xf32, #tpu.memory_space<vmem>>, vector<16x16x4xf32>
    %31 = vector.shape_cast %30 : vector<16x16x4xf32> to vector<256x4xf32>
    %c2 = arith.constant 2 : index
    %c0_33 = arith.constant 0 : index
    %c0_34 = arith.constant 0 : index
    %32 = vector.load %arg4[%c2, %c0_33, %c0_34] : memref<4x4x8xf32, #tpu.memory_space<vmem>>, vector<1x4x8xf32>
    %33 = vector.shape_cast %32 : vector<1x4x8xf32> to vector<4x8xf32>
    %cst_35 = arith.constant dense<0.000000e+00> : vector<256x8xf32>
    %34 = tpu.matmul %31, %33, %cst_35 {dimension_numbers = #tpu.dot_dimension_numbers<[1], [0], [0], [1], [0, 0, 1, 1], [], []>} : vector<256x4xf32>, vector<4x8xf32>, vector<256x8xf32> -> vector<256x8xf32>
    %35 = arith.addf %29, %34 : vector<256x8xf32>
    %c1_36 = arith.constant 1 : index
    %c1_37 = arith.constant 1 : index
    %c0_38 = arith.constant 0 : index
    %36 = vector.load %arg7[%c1_36, %c1_37, %c0_38] : memref<17x17x4xf32, #tpu.memory_space<vmem>>, vector<16x16x4xf32>
    %37 = vector.shape_cast %36 : vector<16x16x4xf32> to vector<256x4xf32>
    %c3 = arith.constant 3 : index
    %c0_39 = arith.constant 0 : index
    %c0_40 = arith.constant 0 : index
    %38 = vector.load %arg4[%c3, %c0_39, %c0_40] : memref<4x4x8xf32, #tpu.memory_space<vmem>>, vector<1x4x8xf32>
    %39 = vector.shape_cast %38 : vector<1x4x8xf32> to vector<4x8xf32>
    %cst_41 = arith.constant dense<0.000000e+00> : vector<256x8xf32>
    %40 = tpu.matmul %37, %39, %cst_41 {dimension_numbers = #tpu.dot_dimension_numbers<[1], [0], [0], [1], [0, 0, 1, 1], [], []>} : vector<256x4xf32>, vector<4x8xf32>, vector<256x8xf32> -> vector<256x8xf32>
    %41 = arith.addf %35, %40 : vector<256x8xf32>
    %c0_42 = arith.constant 0 : index
    %c0_43 = arith.constant 0 : index
    %42 = vector.load %arg5[%c0_42, %c0_43] : memref<1x8xf32, #tpu.memory_space<vmem>>, vector<1x8xf32>
    %43 = vector.shape_cast %42 : vector<1x8xf32> to vector<8xf32>
    %44 = vector.shape_cast %43 : vector<8xf32> to vector<1x8xf32>
    %45 = vector.broadcast %44 : vector<1x8xf32> to vector<256x8xf32>
    %46 = arith.addf %41, %45 : vector<256x8xf32>
    %47 = vector.shape_cast %46 : vector<256x8xf32> to vector<16x16x8xf32>
    %c0_44 = arith.constant 0 : index
    %c0_45 = arith.constant 0 : index
    %c0_46 = arith.constant 0 : index
    %c0_47 = arith.constant 0 : index
    %48 = vector.load %arg6[%c0_44, %c0_45, %c0_46, %c0_47] : memref<1x16x16x8xf32, #tpu.memory_space<vmem>>, vector<1x16x16x8xf32>
    %49 = vector.shape_cast %48 : vector<1x16x16x8xf32> to vector<16x16x8xf32>
    %50 = vector.shape_cast %47 : vector<16x16x8xf32> to vector<1x16x16x8xf32>
    tpu.vector_store %arg6[%c0_44, %c0_45, %c0_46, %c0_47], %50 {strides = array<i32>} : memref<1x16x16x8xf32, #tpu.memory_space<vmem>>, vector<1x16x16x8xf32>,
    return
  }
  func.func @transform_0(%arg0: i32) -> (i32, i32, i32, i32) {
    %c0_i32 = arith.constant 0 : i32
    %c0_i32_0 = arith.constant 0 : i32
    %c0_i32_1 = arith.constant 0 : i32
    %c0_i32_2 = arith.constant 0 : i32
    return %arg0, %c0_i32, %c0_i32_0, %c0_i32_1 : i32, i32, i32, i32
  }
  func.func @transform_1(%arg0: i32) -> (i32, i32) {
    %c0_i32 = arith.constant 0 : i32
    %c0_i32_0 = arith.constant 0 : i32
    %c0_i32_1 = arith.constant 0 : i32
    return %c0_i32, %c0_i32_0 : i32, i32
  }
  func.func @transform_2(%arg0: i32) -> (i32, i32) {
    %c0_i32 = arith.constant 0 : i32
    %c0_i32_0 = arith.constant 0 : i32
    %c0_i32_1 = arith.constant 0 : i32
    return %c0_i32, %c0_i32_0 : i32, i32
  }
  func.func @transform_3(%arg0: i32) -> (i32, i32, i32) {
    %c0_i32 = arith.constant 0 : i32
    %c0_i32_0 = arith.constant 0 : i32
    %c0_i32_1 = arith.constant 0 : i32
    %c0_i32_2 = arith.constant 0 : i32
    return %c0_i32, %c0_i32_0, %c0_i32_1 : i32, i32, i32
  }
  func.func @transform_4(%arg0: i32) -> (i32, i32) {
    %c0_i32 = arith.constant 0 : i32
    %c0_i32_0 = arith.constant 0 : i32
    %c0_i32_1 = arith.constant 0 : i32
    return %c0_i32, %c0_i32_0 : i32, i32
  }
  func.func @transform_5(%arg0: i32) -> (i32, i32, i32, i32) {
    %c0_i32 = arith.constant 0 : i32
    %c0_i32_0 = arith.constant 0 : i32
    %c0_i32_1 = arith.constant 0 : i32
    %c0_i32_2 = arith.constant 0 : i32
    return %arg0, %c0_i32, %c0_i32_0, %c0_i32_1 : i32, i32, i32, i32
  }
}

</mosaic_0001>

<llo_original>
// kernel: tpu_custom_call.1
$region0: #{tpu_custom_call.1}
  #allocation0 [shape = 'u32[]', space=smem, size = 0x4, offset = 0x4, fixed_abs, tag = 'smem constant byte address 0x4 - core index']
  #allocation1 [shape = 'u32[144,128]{1,0:T(1,128)}', space=vmem, size = 0x12000, scoped, tag = 'internal scratch']
  #allocation2 [shape = 'f32[17,17,4]{2,1,0:T(8,128)}', space=vmem, size = 0x33000, scoped, tag = 'scratch operand']
  %s0 = inlined_call_operand.vmem [shape: f32[2,16,16,4], index: 0, kind: input, shape index: {}]
  %s1 = inlined_call_operand.vmem [shape: f32[1,4], index: 1, kind: input, shape index: {}]
  %s2 = inlined_call_operand.vmem [shape: f32[1,4], index: 2, kind: input, shape index: {}]
  %s3 = inlined_call_operand.vmem [shape: f32[4,4,8], index: 3, kind: input, shape index: {}]
  %s4 = inlined_call_operand.vmem [shape: f32[1,8], index: 4, kind: input, shape index: {}]
  %s5 = inlined_call_operand.vmem [shape: f32[2,16,16,8], index: 5, kind: output, shape index: {}]
  %s6 = sld [smem:[#allocation0]]
  $region53: #{tpu_custom_call.1} parent=0
    _
  %s8 = ssub.s32 1, %s6
  %s9 = scalar_select 0, %s8, %s6
  loop: start=0, step=1, limit=4
  $region2: #{tpu_custom_call.1} parent=0 // loop_pre_header
    _
  $region3: #{tpu_custom_call.1} parent=0 // loop_header
    %s11 = sphi 0, %s15
    %p12 = scmp.ge.s32.totalorder %s11, 4
    %s21 = sphi 0, %s23
    %s24 = sphi 0, %s21
    %s25 = sphi 0, %s24
    %s41 = sphi 0, %s25
    %s45 = sphi 0, %s45
    %s47 = sphi 0, %s45
    %s48 = sphi 0, %s47
    %s62 = sphi 0, %s48
    %s66 = sphi 0, %s66
    %s68 = sphi 0, %s66
    %s69 = sphi 0, %s68
    %s83 = sphi 0, %s69
    %s87 = sphi 0, %s87
    %s89 = sphi 0, %s87
    %s90 = sphi 0, %s89
    %s104 = sphi 0, %s90
    %s108 = sphi 0, %s108
    %s110 = sphi 0, %s108
    %s111 = sphi 0, %s110
    %s125 = sphi 0, %s111
    %s131 = sphi 0, %s133
    %s134 = sphi 0, %s131
    %s135 = sphi 0, %s134
    %s151 = sphi 0, %s135
  $region4: #{tpu_custom_call.1} parent=0 // loop_header_branch
    %14 = sbr.rel (%p12) target = $region8
  $region5: #{tpu_custom_call.1} parent=0 // loop_body
    %s16 = ssub.s32 %s11, 1
    %s17 = ssub.s32 %s11, 2
    %s18 = sadd.s32 %s11, 1
    %s19 = ssub.s32 %s11, %s18
    %p20 = scmp.eq.s32.totalorder %s19, 0
    %s22 = sadd.s32 %s21, 1
    %s23 = scalar_select %p20, %s21, %s22
    %p26 = pneg %p20
    %p27 = scmp.eq.s32.totalorder %s11, 1
    %p28 = por %p26, %p27
    %p29 = scmp.ne.s32.totalorder %s21, %s24
    %p30 = scmp.eq.s32.totalorder %s11, 0
    %p31 = por %p29, %p30
    %p32 = scmp.ne.s32.totalorder %s21, %s24
    %p33 = scmp.eq.s32.totalorder %s16, 1
    %p34 = por %p32, %p33
    %p35 = scmp.ne.s32.totalorder %s24, %s25
    %p36 = scmp.eq.s32.totalorder %s16, 0
    %p37 = por %p35, %p36
    %p38 = scmp.ne.s32.totalorder %s24, %s25
    %p39 = scmp.eq.s32.totalorder %s17, 1
    %p40 = por %p38, %p39
    %p42 = scmp.ne.s32.totalorder %s25, %s41
    %p43 = scmp.eq.s32.totalorder %s17, 0
    %p44 = por %p42, %p43
    %s46 = sadd.s32 %s45, 1
    %p49 = scmp.eq.s32.totalorder %s11, 1
    %p50 = scmp.ne.s32.totalorder %s45, %s47
    %p51 = scmp.eq.s32.totalorder %s11, 0
    %p52 = por %p50, %p51
    %p53 = scmp.ne.s32.totalorder %s45, %s47
    %p54 = scmp.eq.s32.totalorder %s16, 1
    %p55 = por %p53, %p54
    %p56 = scmp.ne.s32.totalorder %s47, %s48
    %p57 = scmp.eq.s32.totalorder %s16, 0
    %p58 = por %p56, %p57
    %p59 = scmp.ne.s32.totalorder %s47, %s48
    %p60 = scmp.eq.s32.totalorder %s17, 1
    %p61 = por %p59, %p60
    %p63 = scmp.ne.s32.totalorder %s48, %s62
    %p64 = scmp.eq.s32.totalorder %s17, 0
    %p65 = por %p63, %p64
    %s67 = sadd.s32 %s66, 1
    %p70 = scmp.eq.s32.totalorder %s11, 1
    %p71 = scmp.ne.s32.totalorder %s66, %s68
    %p72 = scmp.eq.s32.totalorder %s11, 0
    %p73 = por %p71, %p72
    %p74 = scmp.ne.s32.totalorder %s66, %s68
    %p75 = scmp.eq.s32.totalorder %s16, 1
    %p76 = por %p74, %p75
    %p77 = scmp.ne.s32.totalorder %s68, %s69
    %p78 = scmp.eq.s32.totalorder %s16, 0
    %p79 = por %p77, %p78
    %p80 = scmp.ne.s32.totalorder %s68, %s69
    %p81 = scmp.eq.s32.totalorder %s17, 1
    %p82 = por %p80, %p81
    %p84 = scmp.ne.s32.totalorder %s69, %s83
    %p85 = scmp.eq.s32.totalorder %s17, 0
    %p86 = por %p84, %p85
    %s88 = sadd.s32 %s87, 1
    %p91 = scmp.eq.s32.totalorder %s11, 1
    %p92 = scmp.ne.s32.totalorder %s87, %s89
    %p93 = scmp.eq.s32.totalorder %s11, 0
    %p94 = por %p92, %p93
    %p95 = scmp.ne.s32.totalorder %s87, %s89
    %p96 = scmp.eq.s32.totalorder %s16, 1
    %p97 = por %p95, %p96
    %p98 = scmp.ne.s32.totalorder %s89, %s90
    %p99 = scmp.eq.s32.totalorder %s16, 0
    %p100 = por %p98, %p99
    %p101 = scmp.ne.s32.totalorder %s89, %s90
    %p102 = scmp.eq.s32.totalorder %s17, 1
    %p103 = por %p101, %p102
    %p105 = scmp.ne.s32.totalorder %s90, %s104
    %p106 = scmp.eq.s32.totalorder %s17, 0
    %p107 = por %p105, %p106
    %s109 = sadd.s32 %s108, 1
    %p112 = scmp.eq.s32.totalorder %s11, 1
    %p113 = scmp.ne.s32.totalorder %s108, %s110
    %p114 = scmp.eq.s32.totalorder %s11, 0
    %p115 = por %p113, %p114
    %p116 = scmp.ne.s32.totalorder %s108, %s110
    %p117 = scmp.eq.s32.totalorder %s16, 1
    %p118 = por %p116, %p117
    %p119 = scmp.ne.s32.totalorder %s110, %s111
    %p120 = scmp.eq.s32.totalorder %s16, 0
    %p121 = por %p119, %p120
    %p122 = scmp.ne.s32.totalorder %s110, %s111
    %p123 = scmp.eq.s32.totalorder %s17, 1
    %p124 = por %p122, %p123
    %p126 = scmp.ne.s32.totalorder %s111, %s125
    %p127 = scmp.eq.s32.totalorder %s17, 0
    %p128 = por %p126, %p127
    %s129 = ssub.s32 %s11, %s18
    %p130 = scmp.eq.s32.totalorder %s129, 0
    %s132 = sadd.s32 %s131, 1
    %s133 = scalar_select %p130, %s131, %s132
    %p136 = pneg %p130
    %p137 = scmp.eq.s32.totalorder %s11, 1
    %p138 = por %p136, %p137
    %p139 = scmp.ne.s32.totalorder %s131, %s134
    %p140 = scmp.eq.s32.totalorder %s11, 0
    %p141 = por %p139, %p140
    %p142 = scmp.ne.s32.totalorder %s131, %s134
    %p143 = scmp.eq.s32.totalorder %s16, 1
    %p144 = por %p142, %p143
    %p145 = scmp.ne.s32.totalorder %s134, %s135
    %p146 = scmp.eq.s32.totalorder %s16, 0
    %p147 = por %p145, %p146
    %p148 = scmp.ne.s32.totalorder %s134, %s135
    %p149 = scmp.eq.s32.totalorder %s17, 1
    %p150 = por %p148, %p149
    %p152 = scmp.ne.s32.totalorder %s135, %s151
    %p153 = scmp.eq.s32.totalorder %s17, 0
    %p154 = por %p152, %p153
    %p155 = scmp.le.s32.totalorder 1, %s11
    %p156 = scmp.lt.s32.totalorder %s11, 3
    %p157 = pnand %p155, %p156
    %p158 = pneg %p157
    // Predicated region
    $region9: #{tpu_custom_call.1} parent=5 // pred_check
      _
    $region10: #{tpu_custom_call.1} parent=5 // pred_check_branch
      %160 = sbr.rel (%p157) target = $region12
    $region11: #{tpu_custom_call.1} parent=5 // pred_region
      %s161 = ssub.s32 %s11, 1
      // Predicated region
      $region13: #{tpu_custom_call.1} parent=11 // pred_check
        %p162 = pneg %p58
      $region14: #{tpu_custom_call.1} parent=11 // pred_check_branch
        %164 = sbr.rel (%p162) target = $region16
      $region15: #{tpu_custom_call.1} parent=11 // pred_region
        _
      $region16: #{tpu_custom_call.1} parent=11 // pred_fallthru
        _
      // Predicated region
      $region17: #{tpu_custom_call.1} parent=11 // pred_check
        %p165 = pneg %p79
      $region18: #{tpu_custom_call.1} parent=11 // pred_check_branch
        %167 = sbr.rel (%p165) target = $region20
      $region19: #{tpu_custom_call.1} parent=11 // pred_region
        _
      $region20: #{tpu_custom_call.1} parent=11 // pred_fallthru
        _
      // Predicated region
      $region21: #{tpu_custom_call.1} parent=11 // pred_check
        %p168 = pneg %p100
      $region22: #{tpu_custom_call.1} parent=11 // pred_check_branch
        %170 = sbr.rel (%p168) target = $region24
      $region23: #{tpu_custom_call.1} parent=11 // pred_region
        _
      $region24: #{tpu_custom_call.1} parent=11 // pred_fallthru
        _
      // Predicated region
      $region25: #{tpu_custom_call.1} parent=11 // pred_check
        %p171 = pneg %p121
      $region26: #{tpu_custom_call.1} parent=11 // pred_check_branch
        %173 = sbr.rel (%p171) target = $region28
      $region27: #{tpu_custom_call.1} parent=11 // pred_region
        _
      $region28: #{tpu_custom_call.1} parent=11 // pred_fallthru
        _
    $region12: #{tpu_custom_call.1} parent=5 // pred_fallthru
      _
    %p174 = scmp.lt.s32.totalorder %s11, 2
    // Predicated region
    $region29: #{tpu_custom_call.1} parent=5 // pred_check
      %p175 = pneg %p174
    $region30: #{tpu_custom_call.1} parent=5 // pred_check_branch
      %177 = sbr.rel (%p175) target = $region32
    $region31: #{tpu_custom_call.1} parent=5 // pred_region
      // Predicated region
      $region33: #{tpu_custom_call.1} parent=31 // pred_check
        %p178 = pneg %p31
      $region34: #{tpu_custom_call.1} parent=31 // pred_check_branch
        %180 = sbr.rel (%p178) target = $region36
      $region35: #{tpu_custom_call.1} parent=31 // pred_region
        %p181 = scmp.lt.s32.totalorder %s11, 1
        %s182 = scalar_select %p181, %s11, 1
        %s183 = smul.addr %s182, 32
        %s184 = smul.addr %s183, 8
        %s185 = scalar_lea.vmem %s0, %s184
      $region36: #{tpu_custom_call.1} parent=31 // pred_fallthru
        _
    $region32: #{tpu_custom_call.1} parent=5 // pred_fallthru
      _
    %p186 = scmp.le.s32.totalorder 1, %s11
    %p187 = scmp.lt.s32.totalorder %s11, 3
    %p188 = pnand %p186, %p187
    %p189 = pneg %p188
    // Predicated region
    $region37: #{tpu_custom_call.1} parent=5 // pred_check
      _
    $region38: #{tpu_custom_call.1} parent=5 // pred_check_branch
      %191 = sbr.rel (%p188) target = $region40
    $region39: #{tpu_custom_call.1} parent=5 // pred_region
      %s192 = ssub.s32 %s11, 1
      %p193 = scmp.lt.s32.totalorder %s16, 1
      %s194 = scalar_select %p193, %s16, 1
      %s195 = smul.addr %s194, 32
      %s196 = smul.addr %s195, 8
      %s197 = scalar_lea.vmem %s0, %s196
      %p198 = pneg %p37
      %p199 = pneg %p34
      %p200 = pneg %p58
      %p201 = pneg %p55
      %p202 = pneg %p79
      %p203 = pneg %p76
      %p204 = pneg %p100
      %p205 = pneg %p97
      %p206 = pneg %p121
      %p207 = pneg %p118
      %p208 = pneg %p147
      %p209 = pneg %p144
      %p210 = scmp.lt.s32.totalorder %s16, 1
      %s211 = scalar_select %p210, %s16, 1
      %s212 = smul.addr %s211, 32
      %s213 = smul.addr %s212, 8
      %s214 = scalar_lea.vmem %s5, %s213
      %p215 = scmp.lt.s32.totalorder %s16, 1
      %s216 = scalar_select %p215, %s16, 1
      %s217 = smul.addr %s216, 32
      %s218 = smul.addr %s217, 8
      %s219 = scalar_lea.vmem %s0, %s218
      %p220 = scmp.lt.s32.totalorder %s16, 1
      %s221 = scalar_select %p220, %s16, 1
      %s222 = smul.addr %s221, 32
      %s223 = smul.addr %s222, 8
      %s224 = scalar_lea.vmem %s5, %s223
      %v225 = vld [vmem:[%s219] sm:$0xff]
      %v226 = vld [vmem:[%s219 + $0x8] sm:$0xff]
      %v227 = vld [vmem:[%s219 + $0x10] sm:$0xff]
      %v228 = vld [vmem:[%s219 + $0x18] sm:$0xff]
      %v229 = vld [vmem:[%s219 + $0x20] sm:$0xff]
      %v230 = vld [vmem:[%s219 + $0x28] sm:$0xff]
      %v231 = vld [vmem:[%s219 + $0x30] sm:$0xff]
      %v232 = vld [vmem:[%s219 + $0x38] sm:$0xff]
      %v233 = vld [vmem:[%s219 + $0x40] sm:$0xff]
      %v234 = vld [vmem:[%s219 + $0x48] sm:$0xff]
      %v235 = vld [vmem:[%s219 + $0x50] sm:$0xff]
      %v236 = vld [vmem:[%s219 + $0x58] sm:$0xff]
      %v237 = vld [vmem:[%s219 + $0x60] sm:$0xff]
      %v238 = vld [vmem:[%s219 + $0x68] sm:$0xff]
      %v239 = vld [vmem:[%s219 + $0x70] sm:$0xff]
      %v240 = vld [vmem:[%s219 + $0x78] sm:$0xff]
      %v241 = vld [vmem:[%s219 + $0x80] sm:$0xff]
      %v242 = vld [vmem:[%s219 + $0x88] sm:$0xff]
      %v243 = vld [vmem:[%s219 + $0x90] sm:$0xff]
      %v244 = vld [vmem:[%s219 + $0x98] sm:$0xff]
      %v245 = vld [vmem:[%s219 + $0xa0] sm:$0xff]
      %v246 = vld [vmem:[%s219 + $0xa8] sm:$0xff]
      %v247 = vld [vmem:[%s219 + $0xb0] sm:$0xff]
      %v248 = vld [vmem:[%s219 + $0xb8] sm:$0xff]
      %v249 = vld [vmem:[%s219 + $0xc0] sm:$0xff]
      %v250 = vld [vmem:[%s219 + $0xc8] sm:$0xff]
      %v251 = vld [vmem:[%s219 + $0xd0] sm:$0xff]
      %v252 = vld [vmem:[%s219 + $0xd8] sm:$0xff]
      %v253 = vld [vmem:[%s219 + $0xe0] sm:$0xff]
      %v254 = vld [vmem:[%s219 + $0xe8] sm:$0xff]
      %v255 = vld [vmem:[%s219 + $0xf0] sm:$0xff]
      %v256 = vld [vmem:[%s219 + $0xf8] sm:$0xff]
      %v257 = vld [vmem:[%s1] sm:$0x1]
      %v259 = vlaneseq
      %v260 = vshrl.u32 %v259, 7
      %v261 = vsub.s32 0, %v260
      %v262 = vrot.slane %v257, %v261
      %v264 = vmul.f32 %v225, %v262
      %v265 = vmul.f32 %v226, %v262
      %v266 = vmul.f32 %v227, %v262
      %v267 = vmul.f32 %v228, %v262
      %v268 = vmul.f32 %v229, %v262
      %v269 = vmul.f32 %v230, %v262
      %v270 = vmul.f32 %v231, %v262
      %v271 = vmul.f32 %v232, %v262
      %v272 = vmul.f32 %v233, %v262
      %v273 = vmul.f32 %v234, %v262
      %v274 = vmul.f32 %v235, %v262
      %v275 = vmul.f32 %v236, %v262
      %v276 = vmul.f32 %v237, %v262
      %v277 = vmul.f32 %v238, %v262
      %v278 = vmul.f32 %v239, %v262
      %v279 = vmul.f32 %v240, %v262
      %v280 = vmul.f32 %v241, %v262
      %v281 = vmul.f32 %v242, %v262
      %v282 = vmul.f32 %v243, %v262
      %v283 = vmul.f32 %v244, %v262
      %v284 = vmul.f32 %v245, %v262
      %v285 = vmul.f32 %v246, %v262
      %v286 = vmul.f32 %v247, %v262
      %v287 = vmul.f32 %v248, %v262
      %v288 = vmul.f32 %v249, %v262
      %v289 = vmul.f32 %v250, %v262
      %v290 = vmul.f32 %v251, %v262
      %v291 = vmul.f32 %v252, %v262
      %v292 = vmul.f32 %v253, %v262
      %v293 = vmul.f32 %v254, %v262
      %v294 = vmul.f32 %v255, %v262
      %v295 = vmul.f32 %v256, %v262
      %v296 = vld [vmem:[%s2] sm:$0x1]
      %v298 = vlaneseq
      %v299 = vshrl.u32 %v298, 7
      %v300 = vsub.s32 0, %v299
      %v301 = vrot.slane %v296, %v300
      %v303 = vadd.f32 %v264, %v301
      %v304 = vadd.f32 %v265, %v301
      %v305 = vadd.f32 %v266, %v301
      %v306 = vadd.f32 %v267, %v301
      %v307 = vadd.f32 %v268, %v301
      %v308 = vadd.f32 %v269, %v301
      %v309 = vadd.f32 %v270, %v301
      %v310 = vadd.f32 %v271, %v301
      %v311 = vadd.f32 %v272, %v301
      %v312 = vadd.f32 %v273, %v301
      %v313 = vadd.f32 %v274, %v301
      %v314 = vadd.f32 %v275, %v301
      %v315 = vadd.f32 %v276, %v301
      %v316 = vadd.f32 %v277, %v301
      %v317 = vadd.f32 %v278, %v301
      %v318 = vadd.f32 %v279, %v301
      %v319 = vadd.f32 %v280, %v301
      %v320 = vadd.f32 %v281, %v301
      %v321 = vadd.f32 %v282, %v301
      %v322 = vadd.f32 %v283, %v301
      %v323 = vadd.f32 %v284, %v301
      %v324 = vadd.f32 %v285, %v301
      %v325 = vadd.f32 %v286, %v301
      %v326 = vadd.f32 %v287, %v301
      %v327 = vadd.f32 %v288, %v301
      %v328 = vadd.f32 %v289, %v301
      %v329 = vadd.f32 %v290, %v301
      %v330 = vadd.f32 %v291, %v301
      %v331 = vadd.f32 %v292, %v301
      %v332 = vadd.f32 %v293, %v301
      %v333 = vadd.f32 %v294, %v301
      %v334 = vadd.f32 %v295, %v301
      %v335 = vmax.f32 %v303, 0.0
      %v336 = vmax.f32 %v304, 0.0
      %v337 = vmax.f32 %v305, 0.0
      %v338 = vmax.f32 %v306, 0.0
      %v339 = vmax.f32 %v307, 0.0
      %v340 = vmax.f32 %v308, 0.0
      %v341 = vmax.f32 %v309, 0.0
      %v342 = vmax.f32 %v310, 0.0
      %v343 = vmax.f32 %v311, 0.0
      %v344 = vmax.f32 %v312, 0.0
      %v345 = vmax.f32 %v313, 0.0
      %v346 = vmax.f32 %v314, 0.0
      %v347 = vmax.f32 %v315, 0.0
      %v348 = vmax.f32 %v316, 0.0
      %v349 = vmax.f32 %v317, 0.0
      %v350 = vmax.f32 %v318, 0.0
      %v351 = vmax.f32 %v319, 0.0
      %v352 = vmax.f32 %v320, 0.0
      %v353 = vmax.f32 %v321, 0.0
      %v354 = vmax.f32 %v322, 0.0
      %v355 = vmax.f32 %v323, 0.0
      %v356 = vmax.f32 %v324, 0.0
      %v357 = vmax.f32 %v325, 0.0
      %v358 = vmax.f32 %v326, 0.0
      %v359 = vmax.f32 %v327, 0.0
      %v360 = vmax.f32 %v328, 0.0
      %v361 = vmax.f32 %v329, 0.0
      %v362 = vmax.f32 %v330, 0.0
      %v363 = vmax.f32 %v331, 0.0
      %v364 = vmax.f32 %v332, 0.0
      %v365 = vmax.f32 %v333, 0.0
      %v366 = vmax.f32 %v334, 0.0
      %vm367 = vcmask 31744
      %368 = vst.msk [vmem:[#allocation2] sm:$0xff] %vm367, %v335
      %369 = vst.msk [vmem:[#allocation2 + $0x8] sm:$0xff] %vm367, %v336
      %370 = vst.msk [vmem:[#allocation2 + $0x18] sm:$0xff] %vm367, %v337
      %371 = vst.msk [vmem:[#allocation2 + $0x20] sm:$0xff] %vm367, %v338
      %372 = vst.msk [vmem:[#allocation2 + $0x30] sm:$0xff] %vm367, %v339
      %373 = vst.msk [vmem:[#allocation2 + $0x38] sm:$0xff] %vm367, %v340
      %374 = vst.msk [vmem:[#allocation2 + $0x48] sm:$0xff] %vm367, %v341
      %375 = vst.msk [vmem:[#allocation2 + $0x50] sm:$0xff] %vm367, %v342
      %376 = vst.msk [vmem:[#allocation2 + $0x60] sm:$0xff] %vm367, %v343
      %377 = vst.msk [vmem:[#allocation2 + $0x68] sm:$0xff] %vm367, %v344
      %378 = vst.msk [vmem:[#allocation2 + $0x78] sm:$0xff] %vm367, %v345
      %379 = vst.msk [vmem:[#allocation2 + $0x80] sm:$0xff] %vm367, %v346
      %380 = vst.msk [vmem:[#allocation2 + $0x90] sm:$0xff] %vm367, %v347
      %381 = vst.msk [vmem:[#allocation2 + $0x98] sm:$0xff] %vm367, %v348
      %382 = vst.msk [vmem:[#allocation2 + $0xa8] sm:$0xff] %vm367, %v349
      %383 = vst.msk [vmem:[#allocation2 + $0xb0] sm:$0xff] %vm367, %v350
      %384 = vst.msk [vmem:[#allocation2 + $0xc0] sm:$0xff] %vm367, %v351
      %385 = vst.msk [vmem:[#allocation2 + $0xc8] sm:$0xff] %vm367, %v352
      %386 = vst.msk [vmem:[#allocation2 + $0xd8] sm:$0xff] %vm367, %v353
      %387 = vst.msk [vmem:[#allocation2 + $0xe0] sm:$0xff] %vm367, %v354
      %388 = vst.msk [vmem:[#allocation2 + $0xf0] sm:$0xff] %vm367, %v355
      %389 = vst.msk [vmem:[#allocation2 + $0xf8] sm:$0xff] %vm367, %v356
      %390 = vst.msk [vmem:[#allocation2 + $0x108] sm:$0xff] %vm367, %v357
      %391 = vst.msk [vmem:[#allocation2 + $0x110] sm:$0xff] %vm367, %v358
      %392 = vst.msk [vmem:[#allocation2 + $0x120] sm:$0xff] %vm367, %v359
      %393 = vst.msk [vmem:[#allocation2 + $0x128] sm:$0xff] %vm367, %v360
      %394 = vst.msk [vmem:[#allocation2 + $0x138] sm:$0xff] %vm367, %v361
      %395 = vst.msk [vmem:[#allocation2 + $0x140] sm:$0xff] %vm367, %v362
      %396 = vst.msk [vmem:[#allocation2 + $0x150] sm:$0xff] %vm367, %v363
      %397 = vst.msk [vmem:[#allocation2 + $0x158] sm:$0xff] %vm367, %v364
      %398 = vst.msk [vmem:[#allocation2 + $0x168] sm:$0xff] %vm367, %v365
      %399 = vst.msk [vmem:[#allocation2 + $0x170] sm:$0xff] %vm367, %v366
      %s400 = scalar_lea.vmem [#allocation2], 384
      %401 = vst.msk [vmem:[%s400] sm:$0xff] %vm367, 0.0
      %402 = vst.msk [vmem:[%s400 + $0x8] sm:$0xff] %vm367, 0.0
      %vm403 = vcmask 24576
      %404 = vst.msk [vmem:[%s400 + $0x10] sm:$0x1] %vm403, 0.0
      %405 = vst.msk [vmem:[#allocation2 + $0x10] sm:$0x1] %vm403, 0.0
      %406 = vst.msk [vmem:[#allocation2 + $0x28] sm:$0x1] %vm403, 0.0
      %407 = vst.msk [vmem:[#allocation2 + $0x40] sm:$0x1] %vm403, 0.0
      %408 = vst.msk [vmem:[#allocation2 + $0x58] sm:$0x1] %vm403, 0.0
      %409 = vst.msk [vmem:[#allocation2 + $0x70] sm:$0x1] %vm403, 0.0
      %410 = vst.msk [vmem:[#allocation2 + $0x88] sm:$0x1] %vm403, 0.0
      %411 = vst.msk [vmem:[#allocation2 + $0xa0] sm:$0x1] %vm403, 0.0
      %412 = vst.msk [vmem:[#allocation2 + $0xb8] sm:$0x1] %vm403, 0.0
      %413 = vst.msk [vmem:[#allocation2 + $0xd0] sm:$0x1] %vm403, 0.0
      %414 = vst.msk [vmem:[#allocation2 + $0xe8] sm:$0x1] %vm403, 0.0
      %415 = vst.msk [vmem:[#allocation2 + $0x100] sm:$0x1] %vm403, 0.0
      %416 = vst.msk [vmem:[#allocation2 + $0x118] sm:$0x1] %vm403, 0.0
      %417 = vst.msk [vmem:[#allocation2 + $0x130] sm:$0x1] %vm403, 0.0
      %418 = vst.msk [vmem:[#allocation2 + $0x148] sm:$0x1] %vm403, 0.0
      %419 = vst.msk [vmem:[#allocation2 + $0x160] sm:$0x1] %vm403, 0.0
      %420 = vst.msk [vmem:[#allocation2 + $0x178] sm:$0x1] %vm403, 0.0
      %421 = vst.msk [vmem:[#allocation2 + $0x190] sm:$0x1] %vm403, 0.0
      %v422 = vld [vmem:[#allocation2] sm:$0xff]
      %v423 = vld [vmem:[#allocation2 + $0x8] sm:$0xff]
      %v424 = vld [vmem:[#allocation2 + $0x18] sm:$0xff]
      %v425 = vld [vmem:[#allocation2 + $0x20] sm:$0xff]
      %v426 = vld [vmem:[#allocation2 + $0x30] sm:$0xff]
      %v427 = vld [vmem:[#allocation2 + $0x38] sm:$0xff]
      %v428 = vld [vmem:[#allocation2 + $0x48] sm:$0xff]
      %v429 = vld [vmem:[#allocation2 + $0x50] sm:$0xff]
      %v430 = vld [vmem:[#allocation2 + $0x60] sm:$0xff]
      %v431 = vld [vmem:[#allocation2 + $0x68] sm:$0xff]
      %v432 = vld [vmem:[#allocation2 + $0x78] sm:$0xff]
      %v433 = vld [vmem:[#allocation2 + $0x80] sm:$0xff]
      %v434 = vld [vmem:[#allocation2 + $0x90] sm:$0xff]
      %v435 = vld [vmem:[#allocation2 + $0x98] sm:$0xff]
      %v436 = vld [vmem:[#allocation2 + $0xa8] sm:$0xff]
      %v437 = vld [vmem:[#allocation2 + $0xb0] sm:$0xff]
      %v438 = vld [vmem:[#allocation2 + $0xc0] sm:$0xff]
      %v439 = vld [vmem:[#allocation2 + $0xc8] sm:$0xff]
      %v440 = vld [vmem:[#allocation2 + $0xd8] sm:$0xff]
      %v441 = vld [vmem:[#allocation2 + $0xe0] sm:$0xff]
      %v442 = vld [vmem:[#allocation2 + $0xf0] sm:$0xff]
      %v443 = vld [vmem:[#allocation2 + $0xf8] sm:$0xff]
      %v444 = vld [vmem:[#allocation2 + $0x108] sm:$0xff]
      %v445 = vld [vmem:[#allocation2 + $0x110] sm:$0xff]
      %v446 = vld [vmem:[#allocation2 + $0x120] sm:$0xff]
      %v447 = vld [vmem:[#allocation2 + $0x128] sm:$0xff]
      %v448 = vld [vmem:[#allocation2 + $0x138] sm:$0xff]
      %v449 = vld [vmem:[#allocation2 + $0x140] sm:$0xff]
      %v450 = vld [vmem:[#allocation2 + $0x150] sm:$0xff]
      %v451 = vld [vmem:[#allocation2 + $0x158] sm:$0xff]
      %v452 = vld [vmem:[#allocation2 + $0x168] sm:$0xff]
      %v453 = vld [vmem:[#allocation2 + $0x170] sm:$0xff]
      %v454 = vld [vmem:[%s3] sm:$0xf]
      %v455 = vld [vmem:[#allocation2 + $0x1] sm:$0xff]
      %v456 = vld [vmem:[#allocation2 + $0x9] sm:$0xff]
      %v457 = vld [vmem:[#allocation2 + $0x19] sm:$0xff]
      %v458 = vld [vmem:[#allocation2 + $0x21] sm:$0xff]
      %v459 = vld [vmem:[#allocation2 + $0x31] sm:$0xff]
      %v460 = vld [vmem:[#allocation2 + $0x39] sm:$0xff]
      %v461 = vld [vmem:[#allocation2 + $0x49] sm:$0xff]
      %v462 = vld [vmem:[#allocation2 + $0x51] sm:$0xff]
      %v463 = vld [vmem:[#allocation2 + $0x61] sm:$0xff]
      %v464 = vld [vmem:[#allocation2 + $0x69] sm:$0xff]
      %v465 = vld [vmem:[#allocation2 + $0x79] sm:$0xff]
      %v466 = vld [vmem:[#allocation2 + $0x81] sm:$0xff]
      %v467 = vld [vmem:[#allocation2 + $0x91] sm:$0xff]
      %v468 = vld [vmem:[#allocation2 + $0x99] sm:$0xff]
      %v469 = vld [vmem:[#allocation2 + $0xa9] sm:$0xff]
      %v470 = vld [vmem:[#allocation2 + $0xb1] sm:$0xff]
      %v471 = vld [vmem:[#allocation2 + $0xc1] sm:$0xff]
      %v472 = vld [vmem:[#allocation2 + $0xc9] sm:$0xff]
      %v473 = vld [vmem:[#allocation2 + $0xd9] sm:$0xff]
      %v474 = vld [vmem:[#allocation2 + $0xe1] sm:$0xff]
      %v475 = vld [vmem:[#allocation2 + $0xf1] sm:$0xff]
      %v476 = vld [vmem:[#allocation2 + $0xf9] sm:$0xff]
      %v477 = vld [vmem:[#allocation2 + $0x109] sm:$0xff]
      %v478 = vld [vmem:[#allocation2 + $0x111] sm:$0xff]
      %v479 = vld [vmem:[#allocation2 + $0x121] sm:$0xff]
      %v480 = vld [vmem:[#allocation2 + $0x129] sm:$0xff]
      %v481 = vld [vmem:[#allocation2 + $0x139] sm:$0xff]
      %v482 = vld [vmem:[#allocation2 + $0x141] sm:$0xff]
      %v483 = vld [vmem:[#allocation2 + $0x151] sm:$0xff]
      %v484 = vld [vmem:[#allocation2 + $0x159] sm:$0xff]
      %v485 = vld [vmem:[#allocation2 + $0x169] sm:$0xff]
      %v486 = vld [vmem:[#allocation2 + $0x171] sm:$0xff]
      %s487 = scalar_lea.vmem %s3, 4
      %v488 = vld [vmem:[%s487] sm:$0xf]
      %v490 = vsel %vm367, %v455, 0
      %v493 = vsel %vm367, %v456, 0
      %v496 = vsel %vm367, %v457, 0
      %v499 = vsel %vm367, %v458, 0
      %v502 = vsel %vm367, %v459, 0
      %v505 = vsel %vm367, %v460, 0
      %v508 = vsel %vm367, %v461, 0
      %v511 = vsel %vm367, %v462, 0
      %v514 = vsel %vm367, %v463, 0
      %v517 = vsel %vm367, %v464, 0
      %v520 = vsel %vm367, %v465, 0
      %v523 = vsel %vm367, %v466, 0
      %v526 = vsel %vm367, %v467, 0
      %v529 = vsel %vm367, %v468, 0
      %v532 = vsel %vm367, %v469, 0
      %v535 = vsel %vm367, %v470, 0
      %v538 = vsel %vm367, %v471, 0
      %v541 = vsel %vm367, %v472, 0
      %v544 = vsel %vm367, %v473, 0
      %v547 = vsel %vm367, %v474, 0
      %v550 = vsel %vm367, %v475, 0
      %v553 = vsel %vm367, %v476, 0
      %v556 = vsel %vm367, %v477, 0
      %v559 = vsel %vm367, %v478, 0
      %v562 = vsel %vm367, %v479, 0
      %v565 = vsel %vm367, %v480, 0
      %v568 = vsel %vm367, %v481, 0
      %v571 = vsel %vm367, %v482, 0
      %v574 = vsel %vm367, %v483, 0
      %v577 = vsel %vm367, %v484, 0
      %v580 = vsel %vm367, %v485, 0
      %v583 = vsel %vm367, %v486, 0
      %vm585 = vcmask 1043456
      %v587 = vsel %vm585, %v488, 0
      %589 = vmatprep.subr.mxu0 0.0
      %590 = vmatpush1.msra.mxu0 0.0
      %591 = vmatprep.subr.mxu0 0.0
      %592 = vmatpush1.msra.mxu0 0.0
      %593 = vmatprep.subr.mxu0 0.0
      %594 = vmatpush1.msra.mxu0 0.0
      %595 = vmatprep.subr.mxu0 0.0
      %596 = vmatpush1.msra.mxu0 0.0
      %597 = vmatprep.subr.mxu0 0.0
      %598 = vmatpush1.msra.mxu0 0.0
      %599 = vmatprep.subr.mxu0 0.0
      %600 = vmatpush1.msra.mxu0 0.0
      %601 = vmatprep.subr.mxu0 0.0
      %602 = vmatpush1.msra.mxu0 0.0
      %603 = vmatprep.subr.mxu0 0.0
      %604 = vmatpush1.msra.mxu0 0.0
      %605 = vmatprep.subr.mxu0 0.0
      %606 = vmatpush1.msra.mxu0 0.0
      %607 = vmatprep.subr.mxu0 0.0
      %608 = vmatpush1.msra.mxu0 0.0
      %609 = vmatprep.subr.mxu0 0.0
      %610 = vmatpush1.msra.mxu0 0.0
      %611 = vmatprep.subr.mxu0 0.0
      %612 = vmatpush1.msra.mxu0 0.0
      %613 = vmatprep.subr.mxu0 0.0
      %614 = vmatpush1.msra.mxu0 0.0
      %615 = vmatprep.subr.mxu0 0.0
      %616 = vmatpush1.msra.mxu0 0.0
      %617 = vmatprep.subr.mxu0 0.0
      %618 = vmatpush1.msra.mxu0 0.0
      %619 = vmatprep.subr.mxu0 0.0
      %620 = vmatpush1.msra.mxu0 %v587
      %621 = vmatprep.subr.mxu0 0.0
      %622 = vmatpush2.msra.mxu0 0.0
      %623 = vmatprep.subr.mxu0 0.0
      %624 = vmatpush2.msra.mxu0 0.0
      %625 = vmatprep.subr.mxu0 0.0
      %626 = vmatpush2.msra.mxu0 0.0
      %627 = vmatprep.subr.mxu0 0.0
      %628 = vmatpush2.msra.mxu0 0.0
      %629 = vmatprep.subr.mxu0 0.0
      %630 = vmatpush2.msra.mxu0 0.0
      %631 = vmatprep.subr.mxu0 0.0
      %632 = vmatpush2.msra.mxu0 0.0
      %633 = vmatprep.subr.mxu0 0.0
      %634 = vmatpush2.msra.mxu0 0.0
      %635 = vmatprep.subr.mxu0 0.0
      %636 = vmatpush2.msra.mxu0 0.0
      %637 = vmatprep.subr.mxu0 0.0
      %638 = vmatpush2.msra.mxu0 0.0
      %639 = vmatprep.subr.mxu0 0.0
      %640 = vmatpush2.msra.mxu0 0.0
      %641 = vmatprep.subr.mxu0 0.0
      %642 = vmatpush2.msra.mxu0 0.0
      %643 = vmatprep.subr.mxu0 0.0
      %644 = vmatpush2.msra.mxu0 0.0
      %645 = vmatprep.subr.mxu0 0.0
      %646 = vmatpush2.msra.mxu0 0.0
      %647 = vmatprep.subr.mxu0 0.0
      %648 = vmatpush2.msra.mxu0 0.0
      %649 = vmatprep.subr.mxu0 0.0
      %650 = vmatpush2.msra.mxu0 0.0
      %651 = vmatprep.subr.mxu0 0.0
      %652 = vmatpush2.msra.mxu0 0.0
      %653 = vmatprep.mubr.f32.mxu0 0.0
      %654 = vmatmul.mubr.f32.gmra.mxu0 %v490
      %v655 = vpop.f32.mrf.mxu0
      %v656 = vadd.f32 0.0, %v655
      %v657 = vpop.f32.mrf.mxu0
      %658 = vmatprep.mubr.f32.mxu0 0.0
      %659 = vmatmul.mubr.f32.gmra.mxu0 %v493
      %v660 = vpop.f32.mrf.mxu0
      %v661 = vadd.f32 0.0, %v660
      %v662 = vpop.f32.mrf.mxu0
      %663 = vmatprep.mubr.f32.mxu0 0.0
      %664 = vmatmul.mubr.f32.gmra.mxu0 %v496
      %v665 = vpop.f32.mrf.mxu0
      %v666 = vadd.f32 0.0, %v665
      %v667 = vpop.f32.mrf.mxu0
      %668 = vmatprep.mubr.f32.mxu0 0.0
      %669 = vmatmul.mubr.f32.gmra.mxu0 %v499
      %v670 = vpop.f32.mrf.mxu0
      %v671 = vadd.f32 0.0, %v670
      %v672 = vpop.f32.mrf.mxu0
      %673 = vmatprep.mubr.f32.mxu0 0.0
      %674 = vmatmul.mubr.f32.gmra.mxu0 %v502
      %v675 = vpop.f32.mrf.mxu0
      %v676 = vadd.f32 0.0, %v675
      %v677 = vpop.f32.mrf.mxu0
      %678 = vmatprep.mubr.f32.mxu0 0.0
      %679 = vmatmul.mubr.f32.gmra.mxu0 %v505
      %v680 = vpop.f32.mrf.mxu0
      %v681 = vadd.f32 0.0, %v680
      %v682 = vpop.f32.mrf.mxu0
      %683 = vmatprep.mubr.f32.mxu0 0.0
      %684 = vmatmul.mubr.f32.gmra.mxu0 %v508
      %v685 = vpop.f32.mrf.mxu0
      %v686 = vadd.f32 0.0, %v685
      %v687 = vpop.f32.mrf.mxu0
      %688 = vmatprep.mubr.f32.mxu0 0.0
      %689 = vmatmul.mubr.f32.gmra.mxu0 %v511
      %v690 = vpop.f32.mrf.mxu0
      %v691 = vadd.f32 0.0, %v690
      %v692 = vpop.f32.mrf.mxu0
      %693 = vmatprep.mubr.f32.mxu0 0.0
      %694 = vmatmul.mubr.f32.gmra.mxu0 %v514
      %v695 = vpop.f32.mrf.mxu0
      %v696 = vadd.f32 0.0, %v695
      %v697 = vpop.f32.mrf.mxu0
      %698 = vmatprep.mubr.f32.mxu0 0.0
      %699 = vmatmul.mubr.f32.gmra.mxu0 %v517
      %v700 = vpop.f32.mrf.mxu0
      %v701 = vadd.f32 0.0, %v700
      %v702 = vpop.f32.mrf.mxu0
      %703 = vmatprep.mubr.f32.mxu0 0.0
      %704 = vmatmul.mubr.f32.gmra.mxu0 %v520
      %v705 = vpop.f32.mrf.mxu0
      %v706 = vadd.f32 0.0, %v705
      %v707 = vpop.f32.mrf.mxu0
      %708 = vmatprep.mubr.f32.mxu0 0.0
      %709 = vmatmul.mubr.f32.gmra.mxu0 %v523
      %v710 = vpop.f32.mrf.mxu0
      %v711 = vadd.f32 0.0, %v710
      %v712 = vpop.f32.mrf.mxu0
      %713 = vmatprep.mubr.f32.mxu0 0.0
      %714 = vmatmul.mubr.f32.gmra.mxu0 %v526
      %v715 = vpop.f32.mrf.mxu0
      %v716 = vadd.f32 0.0, %v715
      %v717 = vpop.f32.mrf.mxu0
      %718 = vmatprep.mubr.f32.mxu0 0.0
      %719 = vmatmul.mubr.f32.gmra.mxu0 %v529
      %v720 = vpop.f32.mrf.mxu0
      %v721 = vadd.f32 0.0, %v720
      %v722 = vpop.f32.mrf.mxu0
      %723 = vmatprep.mubr.f32.mxu0 0.0
      %724 = vmatmul.mubr.f32.gmra.mxu0 %v532
      %v725 = vpop.f32.mrf.mxu0
      %v726 = vadd.f32 0.0, %v725
      %v727 = vpop.f32.mrf.mxu0
      %728 = vmatprep.mubr.f32.mxu0 0.0
      %729 = vmatmul.mubr.f32.gmra.mxu0 %v535
      %v730 = vpop.f32.mrf.mxu0
      %v731 = vadd.f32 0.0, %v730
      %v732 = vpop.f32.mrf.mxu0
      %733 = vmatprep.mubr.f32.mxu0 0.0
      %734 = vmatmul.mubr.f32.gmra.mxu0 %v538
      %v735 = vpop.f32.mrf.mxu0
      %v736 = vadd.f32 0.0, %v735
      %v737 = vpop.f32.mrf.mxu0
      %738 = vmatprep.mubr.f32.mxu0 0.0
      %739 = vmatmul.mubr.f32.gmra.mxu0 %v541
      %v740 = vpop.f32.mrf.mxu0
      %v741 = vadd.f32 0.0, %v740
      %v742 = vpop.f32.mrf.mxu0
      %743 = vmatprep.mubr.f32.mxu0 0.0
      %744 = vmatmul.mubr.f32.gmra.mxu0 %v544
      %v745 = vpop.f32.mrf.mxu0
      %v746 = vadd.f32 0.0, %v745
      %v747 = vpop.f32.mrf.mxu0
      %748 = vmatprep.mubr.f32.mxu0 0.0
      %749 = vmatmul.mubr.f32.gmra.mxu0 %v547
      %v750 = vpop.f32.mrf.mxu0
      %v751 = vadd.f32 0.0, %v750
      %v752 = vpop.f32.mrf.mxu0
      %753 = vmatprep.mubr.f32.mxu0 0.0
      %754 = vmatmul.mubr.f32.gmra.mxu0 %v550
      %v755 = vpop.f32.mrf.mxu0
      %v756 = vadd.f32 0.0, %v755
      %v757 = vpop.f32.mrf.mxu0
      %758 = vmatprep.mubr.f32.mxu0 0.0
      %759 = vmatmul.mubr.f32.gmra.mxu0 %v553
      %v760 = vpop.f32.mrf.mxu0
      %v761 = vadd.f32 0.0, %v760
      %v762 = vpop.f32.mrf.mxu0
      %763 = vmatprep.mubr.f32.mxu0 0.0
      %764 = vmatmul.mubr.f32.gmra.mxu0 %v556
      %v765 = vpop.f32.mrf.mxu0
      %v766 = vadd.f32 0.0, %v765
      %v767 = vpop.f32.mrf.mxu0
      %768 = vmatprep.mubr.f32.mxu0 0.0
      %769 = vmatmul.mubr.f32.gmra.mxu0 %v559
      %v770 = vpop.f32.mrf.mxu0
      %v771 = vadd.f32 0.0, %v770
      %v772 = vpop.f32.mrf.mxu0
      %773 = vmatprep.mubr.f32.mxu0 0.0
      %774 = vmatmul.mubr.f32.gmra.mxu0 %v562
      %v775 = vpop.f32.mrf.mxu0
      %v776 = vadd.f32 0.0, %v775
      %v777 = vpop.f32.mrf.mxu0
      %778 = vmatprep.mubr.f32.mxu0 0.0
      %779 = vmatmul.mubr.f32.gmra.mxu0 %v565
      %v780 = vpop.f32.mrf.mxu0
      %v781 = vadd.f32 0.0, %v780
      %v782 = vpop.f32.mrf.mxu0
      %783 = vmatprep.mubr.f32.mxu0 0.0
      %784 = vmatmul.mubr.f32.gmra.mxu0 %v568
      %v785 = vpop.f32.mrf.mxu0
      %v786 = vadd.f32 0.0, %v785
      %v787 = vpop.f32.mrf.mxu0
      %788 = vmatprep.mubr.f32.mxu0 0.0
      %789 = vmatmul.mubr.f32.gmra.mxu0 %v571
      %v790 = vpop.f32.mrf.mxu0
      %v791 = vadd.f32 0.0, %v790
      %v792 = vpop.f32.mrf.mxu0
      %793 = vmatprep.mubr.f32.mxu0 0.0
      %794 = vmatmul.mubr.f32.gmra.mxu0 %v574
      %v795 = vpop.f32.mrf.mxu0
      %v796 = vadd.f32 0.0, %v795
      %v797 = vpop.f32.mrf.mxu0
      %798 = vmatprep.mubr.f32.mxu0 0.0
      %799 = vmatmul.mubr.f32.gmra.mxu0 %v577
      %v800 = vpop.f32.mrf.mxu0
      %v801 = vadd.f32 0.0, %v800
      %v802 = vpop.f32.mrf.mxu0
      %803 = vmatprep.mubr.f32.mxu0 0.0
      %804 = vmatmul.mubr.f32.gmra.mxu0 %v580
      %v805 = vpop.f32.mrf.mxu0
      %v806 = vadd.f32 0.0, %v805
      %v807 = vpop.f32.mrf.mxu0
      %808 = vmatprep.mubr.f32.mxu0 0.0
      %809 = vmatmul.mubr.f32.gmra.mxu0 %v583
      %v810 = vpop.f32.mrf.mxu0
      %v811 = vadd.f32 0.0, %v810
      %v812 = vpop.f32.mrf.mxu0
      %813 = vdwg.mxu0
      %v815 = vsel %vm367, %v422, 0
      %v818 = vsel %vm367, %v423, 0
      %v821 = vsel %vm367, %v424, 0
      %v824 = vsel %vm367, %v425, 0
      %v827 = vsel %vm367, %v426, 0
      %v830 = vsel %vm367, %v427, 0
      %v833 = vsel %vm367, %v428, 0
      %v836 = vsel %vm367, %v429, 0
      %v839 = vsel %vm367, %v430, 0
      %v842 = vsel %vm367, %v431, 0
      %v845 = vsel %vm367, %v432, 0
      %v848 = vsel %vm367, %v433, 0
      %v851 = vsel %vm367, %v434, 0
      %v854 = vsel %vm367, %v435, 0
      %v857 = vsel %vm367, %v436, 0
      %v860 = vsel %vm367, %v437, 0
      %v863 = vsel %vm367, %v438, 0
      %v866 = vsel %vm367, %v439, 0
      %v869 = vsel %vm367, %v440, 0
      %v872 = vsel %vm367, %v441, 0
      %v875 = vsel %vm367, %v442, 0
      %v878 = vsel %vm367, %v443, 0
      %v881 = vsel %vm367, %v444, 0
      %v884 = vsel %vm367, %v445, 0
      %v887 = vsel %vm367, %v446, 0
      %v890 = vsel %vm367, %v447, 0
      %v893 = vsel %vm367, %v448, 0
      %v896 = vsel %vm367, %v449, 0
      %v899 = vsel %vm367, %v450, 0
      %v902 = vsel %vm367, %v451, 0
      %v905 = vsel %vm367, %v452, 0
      %v908 = vsel %vm367, %v453, 0
      %v911 = vsel %vm585, %v454, 0
      %913 = vmatprep.subr.mxu0 0.0
      %914 = vmatpush1.msra.mxu0 0.0
      %915 = vmatprep.subr.mxu0 0.0
      %916 = vmatpush1.msra.mxu0 0.0
      %917 = vmatprep.subr.mxu0 0.0
      %918 = vmatpush1.msra.mxu0 0.0
      %919 = vmatprep.subr.mxu0 0.0
      %920 = vmatpush1.msra.mxu0 0.0
      %921 = vmatprep.subr.mxu0 0.0
      %922 = vmatpush1.msra.mxu0 0.0
      %923 = vmatprep.subr.mxu0 0.0
      %924 = vmatpush1.msra.mxu0 0.0
      %925 = vmatprep.subr.mxu0 0.0
      %926 = vmatpush1.msra.mxu0 0.0
      %927 = vmatprep.subr.mxu0 0.0
      %928 = vmatpush1.msra.mxu0 0.0
      %929 = vmatprep.subr.mxu0 0.0
      %930 = vmatpush1.msra.mxu0 0.0
      %931 = vmatprep.subr.mxu0 0.0
      %932 = vmatpush1.msra.mxu0 0.0
      %933 = vmatprep.subr.mxu0 0.0
      %934 = vmatpush1.msra.mxu0 0.0
      %935 = vmatprep.subr.mxu0 0.0
      %936 = vmatpush1.msra.mxu0 0.0
      %937 = vmatprep.subr.mxu0 0.0
      %938 = vmatpush1.msra.mxu0 0.0
      %939 = vmatprep.subr.mxu0 0.0
      %940 = vmatpush1.msra.mxu0 0.0
      %941 = vmatprep.subr.mxu0 0.0
      %942 = vmatpush1.msra.mxu0 0.0
      %943 = vmatprep.subr.mxu0 0.0
      %944 = vmatpush1.msra.mxu0 %v911
      %945 = vmatprep.subr.mxu0 0.0
      %946 = vmatpush2.msra.mxu0 0.0
      %947 = vmatprep.subr.mxu0 0.0
      %948 = vmatpush2.msra.mxu0 0.0
      %949 = vmatprep.subr.mxu0 0.0
      %950 = vmatpush2.msra.mxu0 0.0
      %951 = vmatprep.subr.mxu0 0.0
      %952 = vmatpush2.msra.mxu0 0.0
      %953 = vmatprep.subr.mxu0 0.0
      %954 = vmatpush2.msra.mxu0 0.0
      %955 = vmatprep.subr.mxu0 0.0
      %956 = vmatpush2.msra.mxu0 0.0
      %957 = vmatprep.subr.mxu0 0.0
      %958 = vmatpush2.msra.mxu0 0.0
      %959 = vmatprep.subr.mxu0 0.0
      %960 = vmatpush2.msra.mxu0 0.0
      %961 = vmatprep.subr.mxu0 0.0
      %962 = vmatpush2.msra.mxu0 0.0
      %963 = vmatprep.subr.mxu0 0.0
      %964 = vmatpush2.msra.mxu0 0.0
      %965 = vmatprep.subr.mxu0 0.0
      %966 = vmatpush2.msra.mxu0 0.0
      %967 = vmatprep.subr.mxu0 0.0
      %968 = vmatpush2.msra.mxu0 0.0
      %969 = vmatprep.subr.mxu0 0.0
      %970 = vmatpush2.msra.mxu0 0.0
      %971 = vmatprep.subr.mxu0 0.0
      %972 = vmatpush2.msra.mxu0 0.0
      %973 = vmatprep.subr.mxu0 0.0
      %974 = vmatpush2.msra.mxu0 0.0
      %975 = vmatprep.subr.mxu0 0.0
      %976 = vmatpush2.msra.mxu0 0.0
      %977 = vmatprep.mubr.f32.mxu0 0.0
      %978 = vmatmul.mubr.f32.gmra.mxu0 %v815
      %v979 = vpop.f32.mrf.mxu0
      %v980 = vadd.f32 %v656, %v979
      %v981 = vpop.f32.mrf.mxu0
      %982 = vmatprep.mubr.f32.mxu0 0.0
      %983 = vmatmul.mubr.f32.gmra.mxu0 %v818
      %v984 = vpop.f32.mrf.mxu0
      %v985 = vadd.f32 %v661, %v984
      %v986 = vpop.f32.mrf.mxu0
      %987 = vmatprep.mubr.f32.mxu0 0.0
      %988 = vmatmul.mubr.f32.gmra.mxu0 %v821
      %v989 = vpop.f32.mrf.mxu0
      %v990 = vadd.f32 %v666, %v989
      %v991 = vpop.f32.mrf.mxu0
      %992 = vmatprep.mubr.f32.mxu0 0.0
      %993 = vmatmul.mubr.f32.gmra.mxu0 %v824
      %v994 = vpop.f32.mrf.mxu0
      %v995 = vadd.f32 %v671, %v994
      %v996 = vpop.f32.mrf.mxu0
      %997 = vmatprep.mubr.f32.mxu0 0.0
      %998 = vmatmul.mubr.f32.gmra.mxu0 %v827
      %v999 = vpop.f32.mrf.mxu0
      %v1000 = vadd.f32 %v676, %v999
      %v1001 = vpop.f32.mrf.mxu0
      %1002 = vmatprep.mubr.f32.mxu0 0.0
      %1003 = vmatmul.mubr.f32.gmra.mxu0 %v830
      %v1004 = vpop.f32.mrf.mxu0
      %v1005 = vadd.f32 %v681, %v1004
      %v1006 = vpop.f32.mrf.mxu0
      %1007 = vmatprep.mubr.f32.mxu0 0.0
      %1008 = vmatmul.mubr.f32.gmra.mxu0 %v833
      %v1009 = vpop.f32.mrf.mxu0
      %v1010 = vadd.f32 %v686, %v1009
      %v1011 = vpop.f32.mrf.mxu0
      %1012 = vmatprep.mubr.f32.mxu0 0.0
      %1013 = vmatmul.mubr.f32.gmra.mxu0 %v836
      %v1014 = vpop.f32.mrf.mxu0
      %v1015 = vadd.f32 %v691, %v1014
      %v1016 = vpop.f32.mrf.mxu0
      %1017 = vmatprep.mubr.f32.mxu0 0.0
      %1018 = vmatmul.mubr.f32.gmra.mxu0 %v839
      %v1019 = vpop.f32.mrf.mxu0
      %v1020 = vadd.f32 %v696, %v1019
      %v1021 = vpop.f32.mrf.mxu0
      %1022 = vmatprep.mubr.f32.mxu0 0.0
      %1023 = vmatmul.mubr.f32.gmra.mxu0 %v842
      %v1024 = vpop.f32.mrf.mxu0
      %v1025 = vadd.f32 %v701, %v1024
      %v1026 = vpop.f32.mrf.mxu0
      %1027 = vmatprep.mubr.f32.mxu0 0.0
      %1028 = vmatmul.mubr.f32.gmra.mxu0 %v845
      %v1029 = vpop.f32.mrf.mxu0
      %v1030 = vadd.f32 %v706, %v1029
      %v1031 = vpop.f32.mrf.mxu0
      %1032 = vmatprep.mubr.f32.mxu0 0.0
      %1033 = vmatmul.mubr.f32.gmra.mxu0 %v848
      %v1034 = vpop.f32.mrf.mxu0
      %v1035 = vadd.f32 %v711, %v1034
      %v1036 = vpop.f32.mrf.mxu0
      %1037 = vmatprep.mubr.f32.mxu0 0.0
      %1038 = vmatmul.mubr.f32.gmra.mxu0 %v851
      %v1039 = vpop.f32.mrf.mxu0
      %v1040 = vadd.f32 %v716, %v1039
      %v1041 = vpop.f32.mrf.mxu0
      %1042 = vmatprep.mubr.f32.mxu0 0.0
      %1043 = vmatmul.mubr.f32.gmra.mxu0 %v854
      %v1044 = vpop.f32.mrf.mxu0
      %v1045 = vadd.f32 %v721, %v1044
      %v1046 = vpop.f32.mrf.mxu0
      %1047 = vmatprep.mubr.f32.mxu0 0.0
      %1048 = vmatmul.mubr.f32.gmra.mxu0 %v857
      %v1049 = vpop.f32.mrf.mxu0
      %v1050 = vadd.f32 %v726, %v1049
      %v1051 = vpop.f32.mrf.mxu0
      %1052 = vmatprep.mubr.f32.mxu0 0.0
      %1053 = vmatmul.mubr.f32.gmra.mxu0 %v860
      %v1054 = vpop.f32.mrf.mxu0
      %v1055 = vadd.f32 %v731, %v1054
      %v1056 = vpop.f32.mrf.mxu0
      %1057 = vmatprep.mubr.f32.mxu0 0.0
      %1058 = vmatmul.mubr.f32.gmra.mxu0 %v863
      %v1059 = vpop.f32.mrf.mxu0
      %v1060 = vadd.f32 %v736, %v1059
      %v1061 = vpop.f32.mrf.mxu0
      %1062 = vmatprep.mubr.f32.mxu0 0.0
      %1063 = vmatmul.mubr.f32.gmra.mxu0 %v866
      %v1064 = vpop.f32.mrf.mxu0
      %v1065 = vadd.f32 %v741, %v1064
      %v1066 = vpop.f32.mrf.mxu0
      %1067 = vmatprep.mubr.f32.mxu0 0.0
      %1068 = vmatmul.mubr.f32.gmra.mxu0 %v869
      %v1069 = vpop.f32.mrf.mxu0
      %v1070 = vadd.f32 %v746, %v1069
      %v1071 = vpop.f32.mrf.mxu0
      %1072 = vmatprep.mubr.f32.mxu0 0.0
      %1073 = vmatmul.mubr.f32.gmra.mxu0 %v872
      %v1074 = vpop.f32.mrf.mxu0
      %v1075 = vadd.f32 %v751, %v1074
      %v1076 = vpop.f32.mrf.mxu0
      %1077 = vmatprep.mubr.f32.mxu0 0.0
      %1078 = vmatmul.mubr.f32.gmra.mxu0 %v875
      %v1079 = vpop.f32.mrf.mxu0
      %v1080 = vadd.f32 %v756, %v1079
      %v1081 = vpop.f32.mrf.mxu0
      %1082 = vmatprep.mubr.f32.mxu0 0.0
      %1083 = vmatmul.mubr.f32.gmra.mxu0 %v878
      %v1084 = vpop.f32.mrf.mxu0
      %v1085 = vadd.f32 %v761, %v1084
      %v1086 = vpop.f32.mrf.mxu0
      %1087 = vmatprep.mubr.f32.mxu0 0.0
      %1088 = vmatmul.mubr.f32.gmra.mxu0 %v881
      %v1089 = vpop.f32.mrf.mxu0
      %v1090 = vadd.f32 %v766, %v1089
      %v1091 = vpop.f32.mrf.mxu0
      %1092 = vmatprep.mubr.f32.mxu0 0.0
      %1093 = vmatmul.mubr.f32.gmra.mxu0 %v884
      %v1094 = vpop.f32.mrf.mxu0
      %v1095 = vadd.f32 %v771, %v1094
      %v1096 = vpop.f32.mrf.mxu0
      %1097 = vmatprep.mubr.f32.mxu0 0.0
      %1098 = vmatmul.mubr.f32.gmra.mxu0 %v887
      %v1099 = vpop.f32.mrf.mxu0
      %v1100 = vadd.f32 %v776, %v1099
      %v1101 = vpop.f32.mrf.mxu0
      %1102 = vmatprep.mubr.f32.mxu0 0.0
      %1103 = vmatmul.mubr.f32.gmra.mxu0 %v890
      %v1104 = vpop.f32.mrf.mxu0
      %v1105 = vadd.f32 %v781, %v1104
      %v1106 = vpop.f32.mrf.mxu0
      %1107 = vmatprep.mubr.f32.mxu0 0.0
      %1108 = vmatmul.mubr.f32.gmra.mxu0 %v893
      %v1109 = vpop.f32.mrf.mxu0
      %v1110 = vadd.f32 %v786, %v1109
      %v1111 = vpop.f32.mrf.mxu0
      %1112 = vmatprep.mubr.f32.mxu0 0.0
      %1113 = vmatmul.mubr.f32.gmra.mxu0 %v896
      %v1114 = vpop.f32.mrf.mxu0
      %v1115 = vadd.f32 %v791, %v1114
      %v1116 = vpop.f32.mrf.mxu0
      %1117 = vmatprep.mubr.f32.mxu0 0.0
      %1118 = vmatmul.mubr.f32.gmra.mxu0 %v899
      %v1119 = vpop.f32.mrf.mxu0
      %v1120 = vadd.f32 %v796, %v1119
      %v1121 = vpop.f32.mrf.mxu0
      %1122 = vmatprep.mubr.f32.mxu0 0.0
      %1123 = vmatmul.mubr.f32.gmra.mxu0 %v902
      %v1124 = vpop.f32.mrf.mxu0
      %v1125 = vadd.f32 %v801, %v1124
      %v1126 = vpop.f32.mrf.mxu0
      %1127 = vmatprep.mubr.f32.mxu0 0.0
      %1128 = vmatmul.mubr.f32.gmra.mxu0 %v905
      %v1129 = vpop.f32.mrf.mxu0
      %v1130 = vadd.f32 %v806, %v1129
      %v1131 = vpop.f32.mrf.mxu0
      %1132 = vmatprep.mubr.f32.mxu0 0.0
      %1133 = vmatmul.mubr.f32.gmra.mxu0 %v908
      %v1134 = vpop.f32.mrf.mxu0
      %v1135 = vadd.f32 %v811, %v1134
      %v1136 = vpop.f32.mrf.mxu0
      %1137 = vdwg.mxu0
      %s1138 = scalar_lea.vmem [#allocation2], 24
      %v1139 = vld [vmem:[%s1138] sm:$0xff]
      %v1140 = vld [vmem:[%s1138 + $0x8] sm:$0xff]
      %v1141 = vld [vmem:[%s1138 + $0x18] sm:$0xff]
      %v1142 = vld [vmem:[%s1138 + $0x20] sm:$0xff]
      %v1143 = vld [vmem:[%s1138 + $0x30] sm:$0xff]
      %v1144 = vld [vmem:[%s1138 + $0x38] sm:$0xff]
      %v1145 = vld [vmem:[%s1138 + $0x48] sm:$0xff]
      %v1146 = vld [vmem:[%s1138 + $0x50] sm:$0xff]
      %v1147 = vld [vmem:[%s1138 + $0x60] sm:$0xff]
      %v1148 = vld [vmem:[%s1138 + $0x68] sm:$0xff]
      %v1149 = vld [vmem:[%s1138 + $0x78] sm:$0xff]
      %v1150 = vld [vmem:[%s1138 + $0x80] sm:$0xff]
      %v1151 = vld [vmem:[%s1138 + $0x90] sm:$0xff]
      %v1152 = vld [vmem:[%s1138 + $0x98] sm:$0xff]
      %v1153 = vld [vmem:[%s1138 + $0xa8] sm:$0xff]
      %v1154 = vld [vmem:[%s1138 + $0xb0] sm:$0xff]
      %v1155 = vld [vmem:[%s1138 + $0xc0] sm:$0xff]
      %v1156 = vld [vmem:[%s1138 + $0xc8] sm:$0xff]
      %v1157 = vld [vmem:[%s1138 + $0xd8] sm:$0xff]
      %v1158 = vld [vmem:[%s1138 + $0xe0] sm:$0xff]
      %v1159 = vld [vmem:[%s1138 + $0xf0] sm:$0xff]
      %v1160 = vld [vmem:[%s1138 + $0xf8] sm:$0xff]
      %v1161 = vld [vmem:[%s1138 + $0x108] sm:$0xff]
      %v1162 = vld [vmem:[%s1138 + $0x110] sm:$0xff]
      %v1163 = vld [vmem:[%s1138 + $0x120] sm:$0xff]
      %v1164 = vld [vmem:[%s1138 + $0x128] sm:$0xff]
      %v1165 = vld [vmem:[%s1138 + $0x138] sm:$0xff]
      %v1166 = vld [vmem:[%s1138 + $0x140] sm:$0xff]
      %v1167 = vld [vmem:[%s1138 + $0x150] sm:$0xff]
      %v1168 = vld [vmem:[%s1138 + $0x158] sm:$0xff]
      %v1169 = vld [vmem:[%s1138 + $0x168] sm:$0xff]
      %v1170 = vld [vmem:[%s1138 + $0x170] sm:$0xff]
      %s1171 = scalar_lea.vmem %s3, 8
      %v1172 = vld [vmem:[%s1171] sm:$0xf]
      %v1174 = vsel %vm367, %v1139, 0
      %v1177 = vsel %vm367, %v1140, 0
      %v1180 = vsel %vm367, %v1141, 0
      %v1183 = vsel %vm367, %v1142, 0
      %v1186 = vsel %vm367, %v1143, 0
      %v1189 = vsel %vm367, %v1144, 0
      %v1192 = vsel %vm367, %v1145, 0
      %v1195 = vsel %vm367, %v1146, 0
      %v1198 = vsel %vm367, %v1147, 0
      %v1201 = vsel %vm367, %v1148, 0
      %v1204 = vsel %vm367, %v1149, 0
      %v1207 = vsel %vm367, %v1150, 0
      %v1210 = vsel %vm367, %v1151, 0
      %v1213 = vsel %vm367, %v1152, 0
      %v1216 = vsel %vm367, %v1153, 0
      %v1219 = vsel %vm367, %v1154, 0
      %v1222 = vsel %vm367, %v1155, 0
      %v1225 = vsel %vm367, %v1156, 0
      %v1228 = vsel %vm367, %v1157, 0
      %v1231 = vsel %vm367, %v1158, 0
      %v1234 = vsel %vm367, %v1159, 0
      %v1237 = vsel %vm367, %v1160, 0
      %v1240 = vsel %vm367, %v1161, 0
      %v1243 = vsel %vm367, %v1162, 0
      %v1246 = vsel %vm367, %v1163, 0
      %v1249 = vsel %vm367, %v1164, 0
      %v1252 = vsel %vm367, %v1165, 0
      %v1255 = vsel %vm367, %v1166, 0
      %v1258 = vsel %vm367, %v1167, 0
      %v1261 = vsel %vm367, %v1168, 0
      %v1264 = vsel %vm367, %v1169, 0
      %v1267 = vsel %vm367, %v1170, 0
      %v1270 = vsel %vm585, %v1172, 0
      %1272 = vmatprep.subr.mxu0 0.0
      %1273 = vmatpush1.msra.mxu0 0.0
      %1274 = vmatprep.subr.mxu0 0.0
      %1275 = vmatpush1.msra.mxu0 0.0
      %1276 = vmatprep.subr.mxu0 0.0
      %1277 = vmatpush1.msra.mxu0 0.0
      %1278 = vmatprep.subr.mxu0 0.0
      %1279 = vmatpush1.msra.mxu0 0.0
      %1280 = vmatprep.subr.mxu0 0.0
      %1281 = vmatpush1.msra.mxu0 0.0
      %1282 = vmatprep.subr.mxu0 0.0
      %1283 = vmatpush1.msra.mxu0 0.0
      %1284 = vmatprep.subr.mxu0 0.0
      %1285 = vmatpush1.msra.mxu0 0.0
      %1286 = vmatprep.subr.mxu0 0.0
      %1287 = vmatpush1.msra.mxu0 0.0
      %1288 = vmatprep.subr.mxu0 0.0
      %1289 = vmatpush1.msra.mxu0 0.0
      %1290 = vmatprep.subr.mxu0 0.0
      %1291 = vmatpush1.msra.mxu0 0.0
      %1292 = vmatprep.subr.mxu0 0.0
      %1293 = vmatpush1.msra.mxu0 0.0
      %1294 = vmatprep.subr.mxu0 0.0
      %1295 = vmatpush1.msra.mxu0 0.0
      %1296 = vmatprep.subr.mxu0 0.0
      %1297 = vmatpush1.msra.mxu0 0.0
      %1298 = vmatprep.subr.mxu0 0.0
      %1299 = vmatpush1.msra.mxu0 0.0
      %1300 = vmatprep.subr.mxu0 0.0
      %1301 = vmatpush1.msra.mxu0 0.0
      %1302 = vmatprep.subr.mxu0 0.0
      %1303 = vmatpush1.msra.mxu0 %v1270
      %1304 = vmatprep.subr.mxu0 0.0
      %1305 = vmatpush2.msra.mxu0 0.0
      %1306 = vmatprep.subr.mxu0 0.0
      %1307 = vmatpush2.msra.mxu0 0.0
      %1308 = vmatprep.subr.mxu0 0.0
      %1309 = vmatpush2.msra.mxu0 0.0
      %1310 = vmatprep.subr.mxu0 0.0
      %1311 = vmatpush2.msra.mxu0 0.0
      %1312 = vmatprep.subr.mxu0 0.0
      %1313 = vmatpush2.msra.mxu0 0.0
      %1314 = vmatprep.subr.mxu0 0.0
      %1315 = vmatpush2.msra.mxu0 0.0
      %1316 = vmatprep.subr.mxu0 0.0
      %1317 = vmatpush2.msra.mxu0 0.0
      %1318 = vmatprep.subr.mxu0 0.0
      %1319 = vmatpush2.msra.mxu0 0.0
      %1320 = vmatprep.subr.mxu0 0.0
      %1321 = vmatpush2.msra.mxu0 0.0
      %1322 = vmatprep.subr.mxu0 0.0
      %1323 = vmatpush2.msra.mxu0 0.0
      %1324 = vmatprep.subr.mxu0 0.0
      %1325 = vmatpush2.msra.mxu0 0.0
      %1326 = vmatprep.subr.mxu0 0.0
      %1327 = vmatpush2.msra.mxu0 0.0
      %1328 = vmatprep.subr.mxu0 0.0
      %1329 = vmatpush2.msra.mxu0 0.0
      %1330 = vmatprep.subr.mxu0 0.0
      %1331 = vmatpush2.msra.mxu0 0.0
      %1332 = vmatprep.subr.mxu0 0.0
      %1333 = vmatpush2.msra.mxu0 0.0
      %1334 = vmatprep.subr.mxu0 0.0
      %1335 = vmatpush2.msra.mxu0 0.0
      %1336 = vmatprep.mubr.f32.mxu0 0.0
      %1337 = vmatmul.mubr.f32.gmra.mxu0 %v1174
      %v1338 = vpop.f32.mrf.mxu0
      %v1339 = vadd.f32 0.0, %v1338
      %v1340 = vpop.f32.mrf.mxu0
      %1341 = vmatprep.mubr.f32.mxu0 0.0
      %1342 = vmatmul.mubr.f32.gmra.mxu0 %v1177
      %v1343 = vpop.f32.mrf.mxu0
      %v1344 = vadd.f32 0.0, %v1343
      %v1345 = vpop.f32.mrf.mxu0
      %1346 = vmatprep.mubr.f32.mxu0 0.0
      %1347 = vmatmul.mubr.f32.gmra.mxu0 %v1180
      %v1348 = vpop.f32.mrf.mxu0
      %v1349 = vadd.f32 0.0, %v1348
      %v1350 = vpop.f32.mrf.mxu0
      %1351 = vmatprep.mubr.f32.mxu0 0.0
      %1352 = vmatmul.mubr.f32.gmra.mxu0 %v1183
      %v1353 = vpop.f32.mrf.mxu0
      %v1354 = vadd.f32 0.0, %v1353
      %v1355 = vpop.f32.mrf.mxu0
      %1356 = vmatprep.mubr.f32.mxu0 0.0
      %1357 = vmatmul.mubr.f32.gmra.mxu0 %v1186
      %v1358 = vpop.f32.mrf.mxu0
      %v1359 = vadd.f32 0.0, %v1358
      %v1360 = vpop.f32.mrf.mxu0
      %1361 = vmatprep.mubr.f32.mxu0 0.0
      %1362 = vmatmul.mubr.f32.gmra.mxu0 %v1189
      %v1363 = vpop.f32.mrf.mxu0
      %v1364 = vadd.f32 0.0, %v1363
      %v1365 = vpop.f32.mrf.mxu0
      %1366 = vmatprep.mubr.f32.mxu0 0.0
      %1367 = vmatmul.mubr.f32.gmra.mxu0 %v1192
      %v1368 = vpop.f32.mrf.mxu0
      %v1369 = vadd.f32 0.0, %v1368
      %v1370 = vpop.f32.mrf.mxu0
      %1371 = vmatprep.mubr.f32.mxu0 0.0
      %1372 = vmatmul.mubr.f32.gmra.mxu0 %v1195
      %v1373 = vpop.f32.mrf.mxu0
      %v1374 = vadd.f32 0.0, %v1373
      %v1375 = vpop.f32.mrf.mxu0
      %1376 = vmatprep.mubr.f32.mxu0 0.0
      %1377 = vmatmul.mubr.f32.gmra.mxu0 %v1198
      %v1378 = vpop.f32.mrf.mxu0
      %v1379 = vadd.f32 0.0, %v1378
      %v1380 = vpop.f32.mrf.mxu0
      %1381 = vmatprep.mubr.f32.mxu0 0.0
      %1382 = vmatmul.mubr.f32.gmra.mxu0 %v1201
      %v1383 = vpop.f32.mrf.mxu0
      %v1384 = vadd.f32 0.0, %v1383
      %v1385 = vpop.f32.mrf.mxu0
      %1386 = vmatprep.mubr.f32.mxu0 0.0
      %1387 = vmatmul.mubr.f32.gmra.mxu0 %v1204
      %v1388 = vpop.f32.mrf.mxu0
      %v1389 = vadd.f32 0.0, %v1388
      %v1390 = vpop.f32.mrf.mxu0
      %1391 = vmatprep.mubr.f32.mxu0 0.0
      %1392 = vmatmul.mubr.f32.gmra.mxu0 %v1207
      %v1393 = vpop.f32.mrf.mxu0
      %v1394 = vadd.f32 0.0, %v1393
      %v1395 = vpop.f32.mrf.mxu0
      %1396 = vmatprep.mubr.f32.mxu0 0.0
      %1397 = vmatmul.mubr.f32.gmra.mxu0 %v1210
      %v1398 = vpop.f32.mrf.mxu0
      %v1399 = vadd.f32 0.0, %v1398
      %v1400 = vpop.f32.mrf.mxu0
      %1401 = vmatprep.mubr.f32.mxu0 0.0
      %1402 = vmatmul.mubr.f32.gmra.mxu0 %v1213
      %v1403 = vpop.f32.mrf.mxu0
      %v1404 = vadd.f32 0.0, %v1403
      %v1405 = vpop.f32.mrf.mxu0
      %1406 = vmatprep.mubr.f32.mxu0 0.0
      %1407 = vmatmul.mubr.f32.gmra.mxu0 %v1216
      %v1408 = vpop.f32.mrf.mxu0
      %v1409 = vadd.f32 0.0, %v1408
      %v1410 = vpop.f32.mrf.mxu0
      %1411 = vmatprep.mubr.f32.mxu0 0.0
      %1412 = vmatmul.mubr.f32.gmra.mxu0 %v1219
      %v1413 = vpop.f32.mrf.mxu0
      %v1414 = vadd.f32 0.0, %v1413
      %v1415 = vpop.f32.mrf.mxu0
      %1416 = vmatprep.mubr.f32.mxu0 0.0
      %1417 = vmatmul.mubr.f32.gmra.mxu0 %v1222
      %v1418 = vpop.f32.mrf.mxu0
      %v1419 = vadd.f32 0.0, %v1418
      %v1420 = vpop.f32.mrf.mxu0
      %1421 = vmatprep.mubr.f32.mxu0 0.0
      %1422 = vmatmul.mubr.f32.gmra.mxu0 %v1225
      %v1423 = vpop.f32.mrf.mxu0
      %v1424 = vadd.f32 0.0, %v1423
      %v1425 = vpop.f32.mrf.mxu0
      %1426 = vmatprep.mubr.f32.mxu0 0.0
      %1427 = vmatmul.mubr.f32.gmra.mxu0 %v1228
      %v1428 = vpop.f32.mrf.mxu0
      %v1429 = vadd.f32 0.0, %v1428
      %v1430 = vpop.f32.mrf.mxu0
      %1431 = vmatprep.mubr.f32.mxu0 0.0
      %1432 = vmatmul.mubr.f32.gmra.mxu0 %v1231
      %v1433 = vpop.f32.mrf.mxu0
      %v1434 = vadd.f32 0.0, %v1433
      %v1435 = vpop.f32.mrf.mxu0
      %1436 = vmatprep.mubr.f32.mxu0 0.0
      %1437 = vmatmul.mubr.f32.gmra.mxu0 %v1234
      %v1438 = vpop.f32.mrf.mxu0
      %v1439 = vadd.f32 0.0, %v1438
      %v1440 = vpop.f32.mrf.mxu0
      %1441 = vmatprep.mubr.f32.mxu0 0.0
      %1442 = vmatmul.mubr.f32.gmra.mxu0 %v1237
      %v1443 = vpop.f32.mrf.mxu0
      %v1444 = vadd.f32 0.0, %v1443
      %v1445 = vpop.f32.mrf.mxu0
      %1446 = vmatprep.mubr.f32.mxu0 0.0
      %1447 = vmatmul.mubr.f32.gmra.mxu0 %v1240
      %v1448 = vpop.f32.mrf.mxu0
      %v1449 = vadd.f32 0.0, %v1448
      %v1450 = vpop.f32.mrf.mxu0
      %1451 = vmatprep.mubr.f32.mxu0 0.0
      %1452 = vmatmul.mubr.f32.gmra.mxu0 %v1243
      %v1453 = vpop.f32.mrf.mxu0
      %v1454 = vadd.f32 0.0, %v1453
      %v1455 = vpop.f32.mrf.mxu0
      %1456 = vmatprep.mubr.f32.mxu0 0.0
      %1457 = vmatmul.mubr.f32.gmra.mxu0 %v1246
      %v1458 = vpop.f32.mrf.mxu0
      %v1459 = vadd.f32 0.0, %v1458
      %v1460 = vpop.f32.mrf.mxu0
      %1461 = vmatprep.mubr.f32.mxu0 0.0
      %1462 = vmatmul.mubr.f32.gmra.mxu0 %v1249
      %v1463 = vpop.f32.mrf.mxu0
      %v1464 = vadd.f32 0.0, %v1463
      %v1465 = vpop.f32.mrf.mxu0
      %1466 = vmatprep.mubr.f32.mxu0 0.0
      %1467 = vmatmul.mubr.f32.gmra.mxu0 %v1252
      %v1468 = vpop.f32.mrf.mxu0
      %v1469 = vadd.f32 0.0, %v1468
      %v1470 = vpop.f32.mrf.mxu0
      %1471 = vmatprep.mubr.f32.mxu0 0.0
      %1472 = vmatmul.mubr.f32.gmra.mxu0 %v1255
      %v1473 = vpop.f32.mrf.mxu0
      %v1474 = vadd.f32 0.0, %v1473
      %v1475 = vpop.f32.mrf.mxu0
      %1476 = vmatprep.mubr.f32.mxu0 0.0
      %1477 = vmatmul.mubr.f32.gmra.mxu0 %v1258
      %v1478 = vpop.f32.mrf.mxu0
      %v1479 = vadd.f32 0.0, %v1478
      %v1480 = vpop.f32.mrf.mxu0
      %1481 = vmatprep.mubr.f32.mxu0 0.0
      %1482 = vmatmul.mubr.f32.gmra.mxu0 %v1261
      %v1483 = vpop.f32.mrf.mxu0
      %v1484 = vadd.f32 0.0, %v1483
      %v1485 = vpop.f32.mrf.mxu0
      %1486 = vmatprep.mubr.f32.mxu0 0.0
      %1487 = vmatmul.mubr.f32.gmra.mxu0 %v1264
      %v1488 = vpop.f32.mrf.mxu0
      %v1489 = vadd.f32 0.0, %v1488
      %v1490 = vpop.f32.mrf.mxu0
      %1491 = vmatprep.mubr.f32.mxu0 0.0
      %1492 = vmatmul.mubr.f32.gmra.mxu0 %v1267
      %v1493 = vpop.f32.mrf.mxu0
      %v1494 = vadd.f32 0.0, %v1493
      %v1495 = vpop.f32.mrf.mxu0
      %1496 = vdwg.mxu0
      %v1497 = vadd.f32 %v980, %v1339
      %v1498 = vadd.f32 %v985, %v1344
      %v1499 = vadd.f32 %v990, %v1349
      %v1500 = vadd.f32 %v995, %v1354
      %v1501 = vadd.f32 %v1000, %v1359
      %v1502 = vadd.f32 %v1005, %v1364
      %v1503 = vadd.f32 %v1010, %v1369
      %v1504 = vadd.f32 %v1015, %v1374
      %v1505 = vadd.f32 %v1020, %v1379
      %v1506 = vadd.f32 %v1025, %v1384
      %v1507 = vadd.f32 %v1030, %v1389
      %v1508 = vadd.f32 %v1035, %v1394
      %v1509 = vadd.f32 %v1040, %v1399
      %v1510 = vadd.f32 %v1045, %v1404
      %v1511 = vadd.f32 %v1050, %v1409
      %v1512 = vadd.f32 %v1055, %v1414
      %v1513 = vadd.f32 %v1060, %v1419
      %v1514 = vadd.f32 %v1065, %v1424
      %v1515 = vadd.f32 %v1070, %v1429
      %v1516 = vadd.f32 %v1075, %v1434
      %v1517 = vadd.f32 %v1080, %v1439
      %v1518 = vadd.f32 %v1085, %v1444
      %v1519 = vadd.f32 %v1090, %v1449
      %v1520 = vadd.f32 %v1095, %v1454
      %v1521 = vadd.f32 %v1100, %v1459
      %v1522 = vadd.f32 %v1105, %v1464
      %v1523 = vadd.f32 %v1110, %v1469
      %v1524 = vadd.f32 %v1115, %v1474
      %v1525 = vadd.f32 %v1120, %v1479
      %v1526 = vadd.f32 %v1125, %v1484
      %v1527 = vadd.f32 %v1130, %v1489
      %v1528 = vadd.f32 %v1135, %v1494
      %v1529 = vld [vmem:[%s1138 + $0x1] sm:$0xff]
      %v1530 = vld [vmem:[%s1138 + $0x9] sm:$0xff]
      %v1531 = vld [vmem:[%s1138 + $0x19] sm:$0xff]
      %v1532 = vld [vmem:[%s1138 + $0x21] sm:$0xff]
      %v1533 = vld [vmem:[%s1138 + $0x31] sm:$0xff]
      %v1534 = vld [vmem:[%s1138 + $0x39] sm:$0xff]
      %v1535 = vld [vmem:[%s1138 + $0x49] sm:$0xff]
      %v1536 = vld [vmem:[%s1138 + $0x51] sm:$0xff]
      %v1537 = vld [vmem:[%s1138 + $0x61] sm:$0xff]
      %v1538 = vld [vmem:[%s1138 + $0x69] sm:$0xff]
      %v1539 = vld [vmem:[%s1138 + $0x79] sm:$0xff]
      %v1540 = vld [vmem:[%s1138 + $0x81] sm:$0xff]
      %v1541 = vld [vmem:[%s1138 + $0x91] sm:$0xff]
      %v1542 = vld [vmem:[%s1138 + $0x99] sm:$0xff]
      %v1543 = vld [vmem:[%s1138 + $0xa9] sm:$0xff]
      %v1544 = vld [vmem:[%s1138 + $0xb1] sm:$0xff]
      %v1545 = vld [vmem:[%s1138 + $0xc1] sm:$0xff]
      %v1546 = vld [vmem:[%s1138 + $0xc9] sm:$0xff]
      %v1547 = vld [vmem:[%s1138 + $0xd9] sm:$0xff]
      %v1548 = vld [vmem:[%s1138 + $0xe1] sm:$0xff]
      %v1549 = vld [vmem:[%s1138 + $0xf1] sm:$0xff]
      %v1550 = vld [vmem:[%s1138 + $0xf9] sm:$0xff]
      %v1551 = vld [vmem:[%s1138 + $0x109] sm:$0xff]
      %v1552 = vld [vmem:[%s1138 + $0x111] sm:$0xff]
      %v1553 = vld [vmem:[%s1138 + $0x121] sm:$0xff]
      %v1554 = vld [vmem:[%s1138 + $0x129] sm:$0xff]
      %v1555 = vld [vmem:[%s1138 + $0x139] sm:$0xff]
      %v1556 = vld [vmem:[%s1138 + $0x141] sm:$0xff]
      %v1557 = vld [vmem:[%s1138 + $0x151] sm:$0xff]
      %v1558 = vld [vmem:[%s1138 + $0x159] sm:$0xff]
      %v1559 = vld [vmem:[%s1138 + $0x169] sm:$0xff]
      %v1560 = vld [vmem:[%s1138 + $0x171] sm:$0xff]
      %s1561 = scalar_lea.vmem %s3, 12
      %v1562 = vld [vmem:[%s1561] sm:$0xf]
      %v1564 = vsel %vm367, %v1529, 0
      %v1567 = vsel %vm367, %v1530, 0
      %v1570 = vsel %vm367, %v1531, 0
      %v1573 = vsel %vm367, %v1532, 0
      %v1576 = vsel %vm367, %v1533, 0
      %v1579 = vsel %vm367, %v1534, 0
      %v1582 = vsel %vm367, %v1535, 0
      %v1585 = vsel %vm367, %v1536, 0
      %v1588 = vsel %vm367, %v1537, 0
      %v1591 = vsel %vm367, %v1538, 0
      %v1594 = vsel %vm367, %v1539, 0
      %v1597 = vsel %vm367, %v1540, 0
      %v1600 = vsel %vm367, %v1541, 0
      %v1603 = vsel %vm367, %v1542, 0
      %v1606 = vsel %vm367, %v1543, 0
      %v1609 = vsel %vm367, %v1544, 0
      %v1612 = vsel %vm367, %v1545, 0
      %v1615 = vsel %vm367, %v1546, 0
      %v1618 = vsel %vm367, %v1547, 0
      %v1621 = vsel %vm367, %v1548, 0
      %v1624 = vsel %vm367, %v1549, 0
      %v1627 = vsel %vm367, %v1550, 0
      %v1630 = vsel %vm367, %v1551, 0
      %v1633 = vsel %vm367, %v1552, 0
      %v1636 = vsel %vm367, %v1553, 0
      %v1639 = vsel %vm367, %v1554, 0
      %v1642 = vsel %vm367, %v1555, 0
      %v1645 = vsel %vm367, %v1556, 0
      %v1648 = vsel %vm367, %v1557, 0
      %v1651 = vsel %vm367, %v1558, 0
      %v1654 = vsel %vm367, %v1559, 0
      %v1657 = vsel %vm367, %v1560, 0
      %v1660 = vsel %vm585, %v1562, 0
      %1662 = vmatprep.subr.mxu0 0.0
      %1663 = vmatpush1.msra.mxu0 0.0
      %1664 = vmatprep.subr.mxu0 0.0
      %1665 = vmatpush1.msra.mxu0 0.0
      %1666 = vmatprep.subr.mxu0 0.0
      %1667 = vmatpush1.msra.mxu0 0.0
      %1668 = vmatprep.subr.mxu0 0.0
      %1669 = vmatpush1.msra.mxu0 0.0
      %1670 = vmatprep.subr.mxu0 0.0
      %1671 = vmatpush1.msra.mxu0 0.0
      %1672 = vmatprep.subr.mxu0 0.0
      %1673 = vmatpush1.msra.mxu0 0.0
      %1674 = vmatprep.subr.mxu0 0.0
      %1675 = vmatpush1.msra.mxu0 0.0
      %1676 = vmatprep.subr.mxu0 0.0
      %1677 = vmatpush1.msra.mxu0 0.0
      %1678 = vmatprep.subr.mxu0 0.0
      %1679 = vmatpush1.msra.mxu0 0.0
      %1680 = vmatprep.subr.mxu0 0.0
      %1681 = vmatpush1.msra.mxu0 0.0
      %1682 = vmatprep.subr.mxu0 0.0
      %1683 = vmatpush1.msra.mxu0 0.0
      %1684 = vmatprep.subr.mxu0 0.0
      %1685 = vmatpush1.msra.mxu0 0.0
      %1686 = vmatprep.subr.mxu0 0.0
      %1687 = vmatpush1.msra.mxu0 0.0
      %1688 = vmatprep.subr.mxu0 0.0
      %1689 = vmatpush1.msra.mxu0 0.0
      %1690 = vmatprep.subr.mxu0 0.0
      %1691 = vmatpush1.msra.mxu0 0.0
      %1692 = vmatprep.subr.mxu0 0.0
      %1693 = vmatpush1.msra.mxu0 %v1660
      %1694 = vmatprep.subr.mxu0 0.0
      %1695 = vmatpush2.msra.mxu0 0.0
      %1696 = vmatprep.subr.mxu0 0.0
      %1697 = vmatpush2.msra.mxu0 0.0
      %1698 = vmatprep.subr.mxu0 0.0
      %1699 = vmatpush2.msra.mxu0 0.0
      %1700 = vmatprep.subr.mxu0 0.0
      %1701 = vmatpush2.msra.mxu0 0.0
      %1702 = vmatprep.subr.mxu0 0.0
      %1703 = vmatpush2.msra.mxu0 0.0
      %1704 = vmatprep.subr.mxu0 0.0
      %1705 = vmatpush2.msra.mxu0 0.0
      %1706 = vmatprep.subr.mxu0 0.0
      %1707 = vmatpush2.msra.mxu0 0.0
      %1708 = vmatprep.subr.mxu0 0.0
      %1709 = vmatpush2.msra.mxu0 0.0
      %1710 = vmatprep.subr.mxu0 0.0
      %1711 = vmatpush2.msra.mxu0 0.0
      %1712 = vmatprep.subr.mxu0 0.0
      %1713 = vmatpush2.msra.mxu0 0.0
      %1714 = vmatprep.subr.mxu0 0.0
      %1715 = vmatpush2.msra.mxu0 0.0
      %1716 = vmatprep.subr.mxu0 0.0
      %1717 = vmatpush2.msra.mxu0 0.0
      %1718 = vmatprep.subr.mxu0 0.0
      %1719 = vmatpush2.msra.mxu0 0.0
      %1720 = vmatprep.subr.mxu0 0.0
      %1721 = vmatpush2.msra.mxu0 0.0
      %1722 = vmatprep.subr.mxu0 0.0
      %1723 = vmatpush2.msra.mxu0 0.0
      %1724 = vmatprep.subr.mxu0 0.0
      %1725 = vmatpush2.msra.mxu0 0.0
      %1726 = vmatprep.mubr.f32.mxu0 0.0
      %1727 = vmatmul.mubr.f32.gmra.mxu0 %v1564
      %v1728 = vpop.f32.mrf.mxu0
      %v1729 = vadd.f32 0.0, %v1728
      %v1730 = vpop.f32.mrf.mxu0
      %1731 = vmatprep.mubr.f32.mxu0 0.0
      %1732 = vmatmul.mubr.f32.gmra.mxu0 %v1567
      %v1733 = vpop.f32.mrf.mxu0
      %v1734 = vadd.f32 0.0, %v1733
      %v1735 = vpop.f32.mrf.mxu0
      %1736 = vmatprep.mubr.f32.mxu0 0.0
      %1737 = vmatmul.mubr.f32.gmra.mxu0 %v1570
      %v1738 = vpop.f32.mrf.mxu0
      %v1739 = vadd.f32 0.0, %v1738
      %v1740 = vpop.f32.mrf.mxu0
      %1741 = vmatprep.mubr.f32.mxu0 0.0
      %1742 = vmatmul.mubr.f32.gmra.mxu0 %v1573
      %v1743 = vpop.f32.mrf.mxu0
      %v1744 = vadd.f32 0.0, %v1743
      %v1745 = vpop.f32.mrf.mxu0
      %1746 = vmatprep.mubr.f32.mxu0 0.0
      %1747 = vmatmul.mubr.f32.gmra.mxu0 %v1576
      %v1748 = vpop.f32.mrf.mxu0
      %v1749 = vadd.f32 0.0, %v1748
      %v1750 = vpop.f32.mrf.mxu0
      %1751 = vmatprep.mubr.f32.mxu0 0.0
      %1752 = vmatmul.mubr.f32.gmra.mxu0 %v1579
      %v1753 = vpop.f32.mrf.mxu0
      %v1754 = vadd.f32 0.0, %v1753
      %v1755 = vpop.f32.mrf.mxu0
      %1756 = vmatprep.mubr.f32.mxu0 0.0
      %1757 = vmatmul.mubr.f32.gmra.mxu0 %v1582
      %v1758 = vpop.f32.mrf.mxu0
      %v1759 = vadd.f32 0.0, %v1758
      %v1760 = vpop.f32.mrf.mxu0
      %1761 = vmatprep.mubr.f32.mxu0 0.0
      %1762 = vmatmul.mubr.f32.gmra.mxu0 %v1585
      %v1763 = vpop.f32.mrf.mxu0
      %v1764 = vadd.f32 0.0, %v1763
      %v1765 = vpop.f32.mrf.mxu0
      %1766 = vmatprep.mubr.f32.mxu0 0.0
      %1767 = vmatmul.mubr.f32.gmra.mxu0 %v1588
      %v1768 = vpop.f32.mrf.mxu0
      %v1769 = vadd.f32 0.0, %v1768
      %v1770 = vpop.f32.mrf.mxu0
      %1771 = vmatprep.mubr.f32.mxu0 0.0
      %1772 = vmatmul.mubr.f32.gmra.mxu0 %v1591
      %v1773 = vpop.f32.mrf.mxu0
      %v1774 = vadd.f32 0.0, %v1773
      %v1775 = vpop.f32.mrf.mxu0
      %1776 = vmatprep.mubr.f32.mxu0 0.0
      %1777 = vmatmul.mubr.f32.gmra.mxu0 %v1594
      %v1778 = vpop.f32.mrf.mxu0
      %v1779 = vadd.f32 0.0, %v1778
      %v1780 = vpop.f32.mrf.mxu0
      %1781 = vmatprep.mubr.f32.mxu0 0.0
      %1782 = vmatmul.mubr.f32.gmra.mxu0 %v1597
      %v1783 = vpop.f32.mrf.mxu0
      %v1784 = vadd.f32 0.0, %v1783
      %v1785 = vpop.f32.mrf.mxu0
      %1786 = vmatprep.mubr.f32.mxu0 0.0
      %1787 = vmatmul.mubr.f32.gmra.mxu0 %v1600
      %v1788 = vpop.f32.mrf.mxu0
      %v1789 = vadd.f32 0.0, %v1788
      %v1790 = vpop.f32.mrf.mxu0
      %1791 = vmatprep.mubr.f32.mxu0 0.0
      %1792 = vmatmul.mubr.f32.gmra.mxu0 %v1603
      %v1793 = vpop.f32.mrf.mxu0
      %v1794 = vadd.f32 0.0, %v1793
      %v1795 = vpop.f32.mrf.mxu0
      %1796 = vmatprep.mubr.f32.mxu0 0.0
      %1797 = vmatmul.mubr.f32.gmra.mxu0 %v1606
      %v1798 = vpop.f32.mrf.mxu0
      %v1799 = vadd.f32 0.0, %v1798
      %v1800 = vpop.f32.mrf.mxu0
      %1801 = vmatprep.mubr.f32.mxu0 0.0
      %1802 = vmatmul.mubr.f32.gmra.mxu0 %v1609
      %v1803 = vpop.f32.mrf.mxu0
      %v1804 = vadd.f32 0.0, %v1803
      %v1805 = vpop.f32.mrf.mxu0
      %1806 = vmatprep.mubr.f32.mxu0 0.0
      %1807 = vmatmul.mubr.f32.gmra.mxu0 %v1612
      %v1808 = vpop.f32.mrf.mxu0
      %v1809 = vadd.f32 0.0, %v1808
      %v1810 = vpop.f32.mrf.mxu0
      %1811 = vmatprep.mubr.f32.mxu0 0.0
      %1812 = vmatmul.mubr.f32.gmra.mxu0 %v1615
      %v1813 = vpop.f32.mrf.mxu0
      %v1814 = vadd.f32 0.0, %v1813
      %v1815 = vpop.f32.mrf.mxu0
      %1816 = vmatprep.mubr.f32.mxu0 0.0
      %1817 = vmatmul.mubr.f32.gmra.mxu0 %v1618
      %v1818 = vpop.f32.mrf.mxu0
      %v1819 = vadd.f32 0.0, %v1818
      %v1820 = vpop.f32.mrf.mxu0
      %1821 = vmatprep.mubr.f32.mxu0 0.0
      %1822 = vmatmul.mubr.f32.gmra.mxu0 %v1621
      %v1823 = vpop.f32.mrf.mxu0
      %v1824 = vadd.f32 0.0, %v1823
      %v1825 = vpop.f32.mrf.mxu0
      %1826 = vmatprep.mubr.f32.mxu0 0.0
      %1827 = vmatmul.mubr.f32.gmra.mxu0 %v1624
      %v1828 = vpop.f32.mrf.mxu0
      %v1829 = vadd.f32 0.0, %v1828
      %v1830 = vpop.f32.mrf.mxu0
      %1831 = vmatprep.mubr.f32.mxu0 0.0
      %1832 = vmatmul.mubr.f32.gmra.mxu0 %v1627
      %v1833 = vpop.f32.mrf.mxu0
      %v1834 = vadd.f32 0.0, %v1833
      %v1835 = vpop.f32.mrf.mxu0
      %1836 = vmatprep.mubr.f32.mxu0 0.0
      %1837 = vmatmul.mubr.f32.gmra.mxu0 %v1630
      %v1838 = vpop.f32.mrf.mxu0
      %v1839 = vadd.f32 0.0, %v1838
      %v1840 = vpop.f32.mrf.mxu0
      %1841 = vmatprep.mubr.f32.mxu0 0.0
      %1842 = vmatmul.mubr.f32.gmra.mxu0 %v1633
      %v1843 = vpop.f32.mrf.mxu0
      %v1844 = vadd.f32 0.0, %v1843
      %v1845 = vpop.f32.mrf.mxu0
      %1846 = vmatprep.mubr.f32.mxu0 0.0
      %1847 = vmatmul.mubr.f32.gmra.mxu0 %v1636
      %v1848 = vpop.f32.mrf.mxu0
      %v1849 = vadd.f32 0.0, %v1848
      %v1850 = vpop.f32.mrf.mxu0
      %1851 = vmatprep.mubr.f32.mxu0 0.0
      %1852 = vmatmul.mubr.f32.gmra.mxu0 %v1639
      %v1853 = vpop.f32.mrf.mxu0
      %v1854 = vadd.f32 0.0, %v1853
      %v1855 = vpop.f32.mrf.mxu0
      %1856 = vmatprep.mubr.f32.mxu0 0.0
      %1857 = vmatmul.mubr.f32.gmra.mxu0 %v1642
      %v1858 = vpop.f32.mrf.mxu0
      %v1859 = vadd.f32 0.0, %v1858
      %v1860 = vpop.f32.mrf.mxu0
      %1861 = vmatprep.mubr.f32.mxu0 0.0
      %1862 = vmatmul.mubr.f32.gmra.mxu0 %v1645
      %v1863 = vpop.f32.mrf.mxu0
      %v1864 = vadd.f32 0.0, %v1863
      %v1865 = vpop.f32.mrf.mxu0
      %1866 = vmatprep.mubr.f32.mxu0 0.0
      %1867 = vmatmul.mubr.f32.gmra.mxu0 %v1648
      %v1868 = vpop.f32.mrf.mxu0
      %v1869 = vadd.f32 0.0, %v1868
      %v1870 = vpop.f32.mrf.mxu0
      %1871 = vmatprep.mubr.f32.mxu0 0.0
      %1872 = vmatmul.mubr.f32.gmra.mxu0 %v1651
      %v1873 = vpop.f32.mrf.mxu0
      %v1874 = vadd.f32 0.0, %v1873
      %v1875 = vpop.f32.mrf.mxu0
      %1876 = vmatprep.mubr.f32.mxu0 0.0
      %1877 = vmatmul.mubr.f32.gmra.mxu0 %v1654
      %v1878 = vpop.f32.mrf.mxu0
      %v1879 = vadd.f32 0.0, %v1878
      %v1880 = vpop.f32.mrf.mxu0
      %1881 = vmatprep.mubr.f32.mxu0 0.0
      %1882 = vmatmul.mubr.f32.gmra.mxu0 %v1657
      %v1883 = vpop.f32.mrf.mxu0
      %v1884 = vadd.f32 0.0, %v1883
      %v1885 = vpop.f32.mrf.mxu0
      %1886 = vdwg.mxu0
      %v1887 = vadd.f32 %v1497, %v1729
      %v1888 = vadd.f32 %v1498, %v1734
      %v1889 = vadd.f32 %v1499, %v1739
      %v1890 = vadd.f32 %v1500, %v1744
      %v1891 = vadd.f32 %v1501, %v1749
      %v1892 = vadd.f32 %v1502, %v1754
      %v1893 = vadd.f32 %v1503, %v1759
      %v1894 = vadd.f32 %v1504, %v1764
      %v1895 = vadd.f32 %v1505, %v1769
      %v1896 = vadd.f32 %v1506, %v1774
      %v1897 = vadd.f32 %v1507, %v1779
      %v1898 = vadd.f32 %v1508, %v1784
      %v1899 = vadd.f32 %v1509, %v1789
      %v1900 = vadd.f32 %v1510, %v1794
      %v1901 = vadd.f32 %v1511, %v1799
      %v1902 = vadd.f32 %v1512, %v1804
      %v1903 = vadd.f32 %v1513, %v1809
      %v1904 = vadd.f32 %v1514, %v1814
      %v1905 = vadd.f32 %v1515, %v1819
      %v1906 = vadd.f32 %v1516, %v1824
      %v1907 = vadd.f32 %v1517, %v1829
      %v1908 = vadd.f32 %v1518, %v1834
      %v1909 = vadd.f32 %v1519, %v1839
      %v1910 = vadd.f32 %v1520, %v1844
      %v1911 = vadd.f32 %v1521, %v1849
      %v1912 = vadd.f32 %v1522, %v1854
      %v1913 = vadd.f32 %v1523, %v1859
      %v1914 = vadd.f32 %v1524, %v1864
      %v1915 = vadd.f32 %v1525, %v1869
      %v1916 = vadd.f32 %v1526, %v1874
      %v1917 = vadd.f32 %v1527, %v1879
      %v1918 = vadd.f32 %v1528, %v1884
      %v1919 = vld [vmem:[%s4] sm:$0x1]
      %v1921 = vlaneseq
      %v1922 = vshrl.u32 %v1921, 7
      %v1923 = vsub.s32 0, %v1922
      %v1924 = vrot.slane %v1919, %v1923
      %v1926 = vadd.f32 %v1887, %v1924
      %v1927 = vadd.f32 %v1888, %v1924
      %v1928 = vadd.f32 %v1889, %v1924
      %v1929 = vadd.f32 %v1890, %v1924
      %v1930 = vadd.f32 %v1891, %v1924
      %v1931 = vadd.f32 %v1892, %v1924
      %v1932 = vadd.f32 %v1893, %v1924
      %v1933 = vadd.f32 %v1894, %v1924
      %v1934 = vadd.f32 %v1895, %v1924
      %v1935 = vadd.f32 %v1896, %v1924
      %v1936 = vadd.f32 %v1897, %v1924
      %v1937 = vadd.f32 %v1898, %v1924
      %v1938 = vadd.f32 %v1899, %v1924
      %v1939 = vadd.f32 %v1900, %v1924
      %v1940 = vadd.f32 %v1901, %v1924
      %v1941 = vadd.f32 %v1902, %v1924
      %v1942 = vadd.f32 %v1903, %v1924
      %v1943 = vadd.f32 %v1904, %v1924
      %v1944 = vadd.f32 %v1905, %v1924
      %v1945 = vadd.f32 %v1906, %v1924
      %v1946 = vadd.f32 %v1907, %v1924
      %v1947 = vadd.f32 %v1908, %v1924
      %v1948 = vadd.f32 %v1909, %v1924
      %v1949 = vadd.f32 %v1910, %v1924
      %v1950 = vadd.f32 %v1911, %v1924
      %v1951 = vadd.f32 %v1912, %v1924
      %v1952 = vadd.f32 %v1913, %v1924
      %v1953 = vadd.f32 %v1914, %v1924
      %v1954 = vadd.f32 %v1915, %v1924
      %v1955 = vadd.f32 %v1916, %v1924
      %v1956 = vadd.f32 %v1917, %v1924
      %v1957 = vadd.f32 %v1918, %v1924
      %vm1958 = vcmask 64512
      %1959 = vst.msk [vmem:[%s224] sm:$0xff] %vm1958, %v1926
      %1960 = vst.msk [vmem:[%s224 + $0x8] sm:$0xff] %vm1958, %v1927
      %1961 = vst.msk [vmem:[%s224 + $0x10] sm:$0xff] %vm1958, %v1928
      %1962 = vst.msk [vmem:[%s224 + $0x18] sm:$0xff] %vm1958, %v1929
      %1963 = vst.msk [vmem:[%s224 + $0x20] sm:$0xff] %vm1958, %v1930
      %1964 = vst.msk [vmem:[%s224 + $0x28] sm:$0xff] %vm1958, %v1931
      %1965 = vst.msk [vmem:[%s224 + $0x30] sm:$0xff] %vm1958, %v1932
      %1966 = vst.msk [vmem:[%s224 + $0x38] sm:$0xff] %vm1958, %v1933
      %1967 = vst.msk [vmem:[%s224 + $0x40] sm:$0xff] %vm1958, %v1934
      %1968 = vst.msk [vmem:[%s224 + $0x48] sm:$0xff] %vm1958, %v1935
      %1969 = vst.msk [vmem:[%s224 + $0x50] sm:$0xff] %vm1958, %v1936
      %1970 = vst.msk [vmem:[%s224 + $0x58] sm:$0xff] %vm1958, %v1937
      %1971 = vst.msk [vmem:[%s224 + $0x60] sm:$0xff] %vm1958, %v1938
      %1972 = vst.msk [vmem:[%s224 + $0x68] sm:$0xff] %vm1958, %v1939
      %1973 = vst.msk [vmem:[%s224 + $0x70] sm:$0xff] %vm1958, %v1940
      %1974 = vst.msk [vmem:[%s224 + $0x78] sm:$0xff] %vm1958, %v1941
      %1975 = vst.msk [vmem:[%s224 + $0x80] sm:$0xff] %vm1958, %v1942
      %1976 = vst.msk [vmem:[%s224 + $0x88] sm:$0xff] %vm1958, %v1943
      %1977 = vst.msk [vmem:[%s224 + $0x90] sm:$0xff] %vm1958, %v1944
      %1978 = vst.msk [vmem:[%s224 + $0x98] sm:$0xff] %vm1958, %v1945
      %1979 = vst.msk [vmem:[%s224 + $0xa0] sm:$0xff] %vm1958, %v1946
      %1980 = vst.msk [vmem:[%s224 + $0xa8] sm:$0xff] %vm1958, %v1947
      %1981 = vst.msk [vmem:[%s224 + $0xb0] sm:$0xff] %vm1958, %v1948
      %1982 = vst.msk [vmem:[%s224 + $0xb8] sm:$0xff] %vm1958, %v1949
      %1983 = vst.msk [vmem:[%s224 + $0xc0] sm:$0xff] %vm1958, %v1950
      %1984 = vst.msk [vmem:[%s224 + $0xc8] sm:$0xff] %vm1958, %v1951
      %1985 = vst.msk [vmem:[%s224 + $0xd0] sm:$0xff] %vm1958, %v1952
      %1986 = vst.msk [vmem:[%s224 + $0xd8] sm:$0xff] %vm1958, %v1953
      %1987 = vst.msk [vmem:[%s224 + $0xe0] sm:$0xff] %vm1958, %v1954
      %1988 = vst.msk [vmem:[%s224 + $0xe8] sm:$0xff] %vm1958, %v1955
      %1989 = vst.msk [vmem:[%s224 + $0xf0] sm:$0xff] %vm1958, %v1956
      %1990 = vst.msk [vmem:[%s224 + $0xf8] sm:$0xff] %vm1958, %v1957
      %p1991 = scmp.lt.s32.totalorder %s16, 1
      %s1992 = scalar_select %p1991, %s16, 1
      %s1993 = smul.addr %s1992, 32
      %s1994 = smul.addr %s1993, 8
      %s1995 = scalar_lea.vmem %s5, %s1994
      // Predicated region
      $region41: #{tpu_custom_call.1} parent=39 // pred_check
        %p1996 = pneg %p144
      $region42: #{tpu_custom_call.1} parent=39 // pred_check_branch
        %1998 = sbr.rel (%p1996) target = $region44
      $region43: #{tpu_custom_call.1} parent=39 // pred_region
        _
      $region44: #{tpu_custom_call.1} parent=39 // pred_fallthru
        _
    $region40: #{tpu_custom_call.1} parent=5 // pred_fallthru
      _
    %p1999 = scmp.le.s32.totalorder 2, %s11
    // Predicated region
    $region45: #{tpu_custom_call.1} parent=5 // pred_check
      %p2000 = pneg %p1999
    $region46: #{tpu_custom_call.1} parent=5 // pred_check_branch
      %2002 = sbr.rel (%p2000) target = $region48
    $region47: #{tpu_custom_call.1} parent=5 // pred_region
      %s2003 = ssub.s32 %s11, 2
      // Predicated region
      $region49: #{tpu_custom_call.1} parent=47 // pred_check
        %p2004 = pneg %p150
      $region50: #{tpu_custom_call.1} parent=47 // pred_check_branch
        %2006 = sbr.rel (%p2004) target = $region52
      $region51: #{tpu_custom_call.1} parent=47 // pred_region
        %p2007 = scmp.lt.s32.totalorder %s17, 1
        %s2008 = scalar_select %p2007, %s17, 1
        %s2009 = smul.addr %s2008, 32
        %s2010 = smul.addr %s2009, 8
        %s2011 = scalar_lea.vmem %s5, %s2010
      $region52: #{tpu_custom_call.1} parent=47 // pred_fallthru
        _
    $region48: #{tpu_custom_call.1} parent=5 // pred_fallthru
      _
  $region6: #{tpu_custom_call.1} parent=0 // loop_footer
    %s15 = sadd.s32 1, %s11
  $region7: #{tpu_custom_call.1} parent=0 // loop_footer_branch
    %10 = sbr.rel target = $region3
  $region8: #{tpu_custom_call.1} parent=0 // loop_exit
    _

</llo_original>
